<compile_context>
chip_gen: v6e
topology: v6e:2x2x1
jax: 0.10.0
libtpu: 0.0.40
codegen_flags: <defaults>
</compile_context>

<pallas_src>
import jax
import jax.numpy as jnp
from jax import lax
from jax.experimental import pallas as pl
from jax.experimental.pallas import tpu as pltpu

LABEL_SMOOTHING = 0.1
GAMMA = 2.0                 # fixed in the focal loss; hard-coded as q*q in the kernel
CATEGORY_WEIGHT = 1.0
CATEGORY_TYPE_WEIGHT = 0.5
ATTRIBUTE_WEIGHT = 0.3
AUX_WEIGHT = 0.3
TOTAL_EPOCHS = 30
ALPHA_ATTRIBUTES = 1.0


def fashion_head_forward_and_loss(feats, head_params, targets, epoch,
                                  category_weight=CATEGORY_WEIGHT,
                                  category_type_weight=CATEGORY_TYPE_WEIGHT,
                                  attribute_weight=ATTRIBUTE_WEIGHT,
                                  aux_weight=AUX_WEIGHT,
                                  total_epochs=TOTAL_EPOCHS,
                                  alpha_attributes=ALPHA_ATTRIBUTES,
                                  label_smoothing=LABEL_SMOOTHING):
    """Fused final head linears + softmax/sigmoid probs + multi-task loss.

    feats:
      'fused_feat'       (B, E)    fusion-MLP output (== post-attention feature, see NOTE)
      'category_hidden'  (B, E//2) category_classifier penultimate activation
      'attribute_hidden' (B, 512)  attribute_predictor penultimate activation
      'image_feat'       (B, 512)  flattened feature_adapter output
      'heatmap_feat'     (B, 128)  flattened heatmap_encoder output
    head_params: name -> (w, b), w laid out (in_dim, out_dim)
    targets: 'category_labels' (B,), 'category_type_labels' (B,), 'attribute_targets' (B, NA)
    epoch: static Python number (host-side schedule).
    """
    # All loss hyper-parameters fold at trace time (no SMEM params operand).
    scaling = max(0.1, 1.0 - epoch / total_epochs)
    aux_w = float(aux_weight * scaling)
    cat_w = float(category_weight)
    type_w = float(category_type_weight)
    attr_w = float(attribute_weight)
    alpha = float(alpha_attributes)
    smooth = float(label_smoothing)

    fused = feats['fused_feat']
    cat_hidden = feats['category_hidden']
    attr_hidden = feats['attribute_hidden']
    img_feat = feats['image_feat']
    hm_feat = feats['heatmap_feat']

    w_cat, b_cat = head_params['category']
    w_type, b_type = head_params['category_type']
    w_attr, b_attr = head_params['attribute']
    w_img, b_img = head_params['image_aux']
    w_hm, b_hm = head_params['heatmap_aux']

    B = fused.shape[0]
    NC = w_cat.shape[1]
    NT = w_type.shape[1]
    NA = w_attr.shape[1]
    out_dtype = fused.dtype

    # NOTE: assumes an un-padded batch (1/B normalisation). If the batch is ever padded
    # for tile alignment, mask pad rows before calling.
    inv_b = 1.0 / B
    inv_bna = 1.0 / (B * NA)

    def kernel(fused_ref, cat_hid_ref, attr_hid_ref, img_ref, hm_ref,
               w_cat_ref, b_cat_ref, w_type_ref, b_type_ref,
               w_attr_ref, b_attr_ref, w_img_ref, b_img_ref, w_hm_ref, b_hm_ref,
               attr_tgt_ref, cat_lbl_ref, type_lbl_ref,
               cat_logits_ref, type_logits_ref, attr_logits_ref,
               img_logits_ref, hm_logits_ref,
               cat_probs_ref, type_probs_ref, attr_probs_ref,
               losses_ref):
        f32 = jnp.float32

        # In-register f32 cast right after load: bf16 activations/weights DMA at half
        # the bytes; math stays f32 (mandatory on v5e, cheap VALU filler everywhere).
        def linear(x_ref, w_ref, b_ref):
            x = x_ref[...].astype(f32)
            w = w_ref[...].astype(f32)
            b = b_ref[...].astype(f32)
            return jnp.dot(x, w, preferred_element_type=f32) + b

        # Five final head linears on the MXU; logits never leave registers before the loss.
        cat_logits = linear(cat_hid_ref, w_cat_ref, b_cat_ref)       # (B, NC)
        type_logits = linear(fused_ref, w_type_ref, b_type_ref)      # (B, NT)
        attr_logits = linear(attr_hid_ref, w_attr_ref, b_attr_ref)   # (B, NA)
        img_logits = linear(img_ref, w_img_ref, b_img_ref)           # (B, NC)
        hm_logits = linear(hm_ref, w_hm_ref, b_hm_ref)               # (B, NT)

        def log_softmax_and_probs(x):
            m = jnp.max(x, axis=-1, keepdims=True)
            e = jnp.exp(x - m)
            s = jnp.sum(e, axis=-1, keepdims=True)
            return (x - m) - jnp.log(s), e / s

        def smoothed_ce_mean(logp, onehot):
            C = logp.shape[-1]
            nll = -jnp.sum(onehot * logp, axis=-1, keepdims=True)      # (B, 1)
            sum_logp = jnp.sum(logp, axis=-1, keepdims=True)           # (B, 1)
            per = (1.0 - smooth) * nll - (smooth / C) * sum_logp
            return jnp.sum(per) * inv_b

        # One one-hot per label set, reused by the main head and its aux head.
        cat_onehot = (lax.broadcasted_iota(jnp.int32, (B, NC), 1)
                      == cat_lbl_ref[...]).astype(f32)
        type_onehot = (lax.broadcasted_iota(jnp.int32, (B, NT), 1)
                       == type_lbl_ref[...]).astype(f32)

        cat_logp, cat_probs = log_softmax_and_probs(cat_logits)
        type_logp, type_probs = log_softmax_and_probs(type_logits)
        img_logp, _ = log_softmax_and_probs(img_logits)
        hm_logp, _ = log_softmax_and_probs(hm_logits)

        category_loss = smoothed_ce_mean(cat_logp, cat_onehot)
        category_type_loss = smoothed_ce_mean(type_logp, type_onehot)
        image_aux_loss = smoothed_ce_mean(img_logp, cat_onehot)
        heatmap_aux_loss = smoothed_ce_mean(hm_logp, type_onehot)

        # Multi-label focal loss (gamma=2). pt = exp(-bce) is exact even for soft
        # targets; plain divide (no approx reciprocal) keeps tolerances tight.
        x = attr_logits
        t = attr_tgt_ref[...].astype(f32)
        e_na = jnp.exp(-jnp.abs(x))
        bce = jnp.maximum(x, 0.0) - x * t + jnp.log1p(e_na)
        pt = jnp.exp(-bce)
        q = 1.0 - pt
        attribute_loss = jnp.sum(alpha * q * q * bce) * inv_bna

        # sigmoid(x) derived from the exp(-|x|) already computed for the BCE.
        inv_1pe = 1.0 / (1.0 + e_na)
        attr_probs = jnp.where(x >= 0.0, inv_1pe, e_na * inv_1pe)

        total_aux_loss = image_aux_loss + heatmap_aux_loss
        total_loss = (cat_w * category_loss
                      + type_w * category_type_loss
                      + attr_w * attribute_loss
                      + aux_w * total_aux_loss)

        # Forward-pass outputs (model output dict).
        cat_logits_ref[...] = cat_logits.astype(cat_logits_ref.dtype)
        type_logits_ref[...] = type_logits.astype(type_logits_ref.dtype)
        attr_logits_ref[...] = attr_logits.astype(attr_logits_ref.dtype)
        img_logits_ref[...] = img_logits.astype(img_logits_ref.dtype)
        hm_logits_ref[...] = hm_logits.astype(hm_logits_ref.dtype)
        cat_probs_ref[...] = cat_probs.astype(cat_probs_ref.dtype)
        type_probs_ref[...] = type_probs.astype(type_probs_ref.dtype)
        attr_probs_ref[...] = attr_probs.astype(attr_probs_ref.dtype)

        # Loss scalars (scalar epilogue to SMEM).
        losses_ref[0] = total_loss
        losses_ref[1] = category_loss
        losses_ref[2] = category_type_loss
        losses_ref[3] = attribute_loss
        losses_ref[4] = image_aux_loss
        losses_ref[5] = heatmap_aux_loss
        losses_ref[6] = total_aux_loss

    vmem = pl.BlockSpec(memory_space=pltpu.VMEM)
    smem = pl.BlockSpec(memory_space=pltpu.SMEM)

    results = pl.pallas_call(
        kernel,
        out_shape=(
            jax.ShapeDtypeStruct((B, NC), out_dtype),   # category_logits
            jax.ShapeDtypeStruct((B, NT), out_dtype),   # category_type_logits
            jax.ShapeDtypeStruct((B, NA), out_dtype),   # attribute_preds
            jax.ShapeDtypeStruct((B, NC), out_dtype),   # image_aux_logits
            jax.ShapeDtypeStruct((B, NT), out_dtype),   # heatmap_aux_logits
            jax.ShapeDtypeStruct((B, NC), out_dtype),   # category_probs
            jax.ShapeDtypeStruct((B, NT), out_dtype),   # category_type_probs
            jax.ShapeDtypeStruct((B, NA), out_dtype),   # attribute_probs
            jax.ShapeDtypeStruct((7,), jnp.float32),    # loss scalars
        ),
        in_specs=[vmem] * 18,
        out_specs=(vmem,) * 8 + (smem,),
    )(
        fused, cat_hidden, attr_hidden, img_feat, hm_feat,
        w_cat, b_cat.reshape(1, NC),
        w_type, b_type.reshape(1, NT),
        w_attr, b_attr.reshape(1, NA),
        w_img, b_img.reshape(1, NC),
        w_hm, b_hm.reshape(1, NT),
        targets['attribute_targets'],
        targets['category_labels'].astype(jnp.int32).reshape(B, 1),
        targets['category_type_labels'].astype(jnp.int32).reshape(B, 1),
    )

    (cat_logits, type_logits, attr_logits, img_logits, hm_logits,
     cat_probs, type_probs, attr_probs, losses) = results

    outputs = {
        'category_logits': cat_logits,
        'category_probs': cat_probs,
        'category_type_logits': type_logits,
        'category_type_probs': type_probs,
        'attribute_preds': attr_logits,
        'attribute_probs': attr_probs,
        'image_aux_logits': img_logits,
        'heatmap_aux_logits': hm_logits,
    }
    total_loss = losses[0]
    loss_dict = {
        'category_loss': losses[1],
        'category_type_loss': losses[2],
        'attribute_loss': losses[3],
        'image_aux_loss': losses[4],
        'heatmap_aux_loss': losses[5],
        'total_aux_loss': losses[6],
    }
    return outputs, total_loss, loss_dict


# ---------------- pure-JAX references (for correctness checks) ----------------
def _ref_ce(logits, labels, smoothing=LABEL_SMOOTHING):
    logp = jax.nn.log_softmax(logits.astype(jnp.float32), axis=-1)
    nll = -jnp.take_along_axis(logp, labels[:, None], axis=-1)[:, 0]
    smooth_term = -jnp.mean(logp, axis=-1)
    return jnp.mean((1.0 - smoothing) * nll + smoothing * smooth_term)


def _ref_focal(logits, tgt, alpha=ALPHA_ATTRIBUTES, gamma=GAMMA):
    x = logits.astype(jnp.float32)
    bce = jnp.maximum(x, 0.0) - x * tgt + jnp.log1p(jnp.exp(-jnp.abs(x)))
    pt = jnp.exp(-bce)
    return jnp.mean(alpha * (1.0 - pt) ** gamma * bce)


if __name__ == "__main__":
    # FashionHybridModel defaults: 46 categories, 3 types, 50 attributes, embed_dim 512,
    # category-head hidden 256, heatmap feature dim 128. Small batch of 8.
    B = 8
    NC, NT, NA = 46, 3, 50
    E, E_CAT, D_HM = 512, 256, 128

    key = jax.random.PRNGKey(0)
    ks = jax.random.split(key, 16)

    feats = {
        'fused_feat': jax.random.normal(ks[0], (B, E), jnp.float32),
        'category_hidden': jax.random.normal(ks[1], (B, E_CAT), jnp.float32),
        'attribute_hidden': jax.random.normal(ks[2], (B, E), jnp.float32),
        'image_feat': jax.random.normal(ks[3], (B, E), jnp.float32),
        'heatmap_feat': jax.random.normal(ks[4], (B, D_HM), jnp.float32),
    }

    def init_head(k, din, dout):
        kw, kb = jax.random.split(k)
        w = jax.random.normal(kw, (din, dout), jnp.float32) * (din ** -0.5)
        b = jax.random.normal(kb, (dout,), jnp.float32) * 0.01
        return w, b

    head_params = {
        'category': init_head(ks[5], E_CAT, NC),
        'category_type': init_head(ks[6], E, NT),
        'attribute': init_head(ks[7], E, NA),
        'image_aux': init_head(ks[8], E, NC),
        'heatmap_aux': init_head(ks[9], D_HM, NT),
    }

    targets = {
        'category_labels': jax.random.randint(ks[10], (B,), 0, NC, jnp.int32),
        'category_type_labels': jax.random.randint(ks[11], (B,), 0, NT, jnp.int32),
        'attribute_targets': jax.random.bernoulli(ks[12], 0.3, (B, NA)).astype(jnp.float32),
    }
    epoch = 5

    outputs, total_loss, loss_dict = fashion_head_forward_and_loss(
        feats, head_params, targets, epoch)
    jax.block_until_ready(total_loss)

    # ---- check 1: head logits against a plain-XLA reference (loose: MXU f32 pass
    #               precision can differ slightly from a HIGHEST-precision XLA dot) ----
    hi = jax.lax.Precision.HIGHEST

    def ref_linear(x, wb):
        w, b = wb
        return jnp.dot(x, w, precision=hi) + b

    ref_logits = {
        'category_logits': ref_linear(feats['category_hidden'], head_params['category']),
        'category_type_logits': ref_linear(feats['fused_feat'], head_params['category_type']),
        'attribute_preds': ref_linear(feats['attribute_hidden'], head_params['attribute']),
        'image_aux_logits': ref_linear(feats['image_feat'], head_params['image_aux']),
        'heatmap_aux_logits': ref_linear(feats['heatmap_feat'], head_params['heatmap_aux']),
    }
    for name, ref in ref_logits.items():
        assert jnp.allclose(outputs[name], ref, rtol=2e-2, atol=2e-2), name

    # probs are exact functions of the kernel's own logits -> tight check
    assert jnp.allclose(outputs['category_probs'],
                        jax.nn.softmax(outputs['category_logits'], axis=-1),
                        rtol=1e-3, atol=1e-4)
    assert jnp.allclose(outputs['category_type_probs'],
                        jax.nn.softmax(outputs['category_type_logits'], axis=-1),
                        rtol=1e-3, atol=1e-4)
    assert jnp.allclose(outputs['attribute_probs'],
                        jax.nn.sigmoid(outputs['attribute_preds']),
                        rtol=1e-3, atol=1e-4)

    # ---- check 2: fused multi-task loss, exact math over the kernel's own logits ----
    ref_cat = _ref_ce(outputs['category_logits'], targets['category_labels'])
    ref_typ = _ref_ce(outputs['category_type_logits'], targets['category_type_labels'])
    ref_img = _ref_ce(outputs['image_aux_logits'], targets['category_labels'])
    ref_hm = _ref_ce(outputs['heatmap_aux_logits'], targets['category_type_labels'])
    ref_attr = _ref_focal(outputs['attribute_preds'], targets['attribute_targets'])
    scaling = max(0.1, 1.0 - epoch / TOTAL_EPOCHS)
    ref_total = (CATEGORY_WEIGHT * ref_cat + CATEGORY_TYPE_WEIGHT * ref_typ
                 + ATTRIBUTE_WEIGHT * ref_attr
                 + AUX_WEIGHT * scaling * (ref_img + ref_hm))

    assert jnp.allclose(loss_dict['category_loss'], ref_cat, rtol=1e-3, atol=1e-5)
    assert jnp.allclose(loss_dict['category_type_loss'], ref_typ, rtol=1e-3, atol=1e-5)
    assert jnp.allclose(loss_dict['image_aux_loss'], ref_img, rtol=1e-3, atol=1e-5)
    assert jnp.allclose(loss_dict['heatmap_aux_loss'], ref_hm, rtol=1e-3, atol=1e-5)
    assert jnp.allclose(loss_dict['attribute_loss'], ref_attr, rtol=1e-3, atol=1e-5)
    assert jnp.allclose(total_loss, ref_total, rtol=1e-3, atol=1e-5), (total_loss, ref_total)

    print("KERNEL_OK")
</pallas_src>

<mosaic_0001>
module attributes {stable_mosaic.version = 11 : i64} {
  func.func @kernel(%arg0: memref<8x512xf32, #tpu.memory_space<vmem>>, %arg1: memref<8x256xf32, #tpu.memory_space<vmem>>, %arg2: memref<8x512xf32, #tpu.memory_space<vmem>>, %arg3: memref<8x512xf32, #tpu.memory_space<vmem>>, %arg4: memref<8x128xf32, #tpu.memory_space<vmem>>, %arg5: memref<256x46xf32, #tpu.memory_space<vmem>>, %arg6: memref<1x46xf32, #tpu.memory_space<vmem>>, %arg7: memref<512x3xf32, #tpu.memory_space<vmem>>, %arg8: memref<1x3xf32, #tpu.memory_space<vmem>>, %arg9: memref<512x50xf32, #tpu.memory_space<vmem>>, %arg10: memref<1x50xf32, #tpu.memory_space<vmem>>, %arg11: memref<512x46xf32, #tpu.memory_space<vmem>>, %arg12: memref<1x46xf32, #tpu.memory_space<vmem>>, %arg13: memref<128x3xf32, #tpu.memory_space<vmem>>, %arg14: memref<1x3xf32, #tpu.memory_space<vmem>>, %arg15: memref<8x50xf32, #tpu.memory_space<vmem>>, %arg16: memref<8x1xi32, #tpu.memory_space<vmem>>, %arg17: memref<8x1xi32, #tpu.memory_space<vmem>>, %arg18: memref<8x46xf32, #tpu.memory_space<vmem>>, %arg19: memref<8x3xf32, #tpu.memory_space<vmem>>, %arg20: memref<8x50xf32, #tpu.memory_space<vmem>>, %arg21: memref<8x46xf32, #tpu.memory_space<vmem>>, %arg22: memref<8x3xf32, #tpu.memory_space<vmem>>, %arg23: memref<8x46xf32, #tpu.memory_space<vmem>>, %arg24: memref<8x3xf32, #tpu.memory_space<vmem>>, %arg25: memref<8x50xf32, #tpu.memory_space<vmem>>, %arg26: memref<7xf32, #tpu.memory_space<smem>>) attributes {dimension_semantics = [], scalar_prefetch = 0 : i64, scratch_operands = 0 : i64, tpu.core_type = #tpu.core_type<tc>} {
    %c0 = arith.constant 0 : index
    %c0_0 = arith.constant 0 : index
    %0 = vector.load %arg1[%c0, %c0_0] : memref<8x256xf32, #tpu.memory_space<vmem>>, vector<8x256xf32>
    %c0_1 = arith.constant 0 : index
    %c0_2 = arith.constant 0 : index
    %1 = vector.load %arg5[%c0_1, %c0_2] : memref<256x46xf32, #tpu.memory_space<vmem>>, vector<256x46xf32>
    %c0_3 = arith.constant 0 : index
    %c0_4 = arith.constant 0 : index
    %2 = vector.load %arg6[%c0_3, %c0_4] : memref<1x46xf32, #tpu.memory_space<vmem>>, vector<1x46xf32>
    %cst = arith.constant dense<0.000000e+00> : vector<8x46xf32>
    %3 = tpu.matmul %0, %1, %cst {dimension_numbers = #tpu.dot_dimension_numbers<[1], [0], [0], [1], [0, 0, 1, 1], [], []>} : vector<8x256xf32>, vector<256x46xf32>, vector<8x46xf32> -> vector<8x46xf32>
    %4 = vector.broadcast %2 : vector<1x46xf32> to vector<8x46xf32>
    %5 = arith.addf %3, %4 : vector<8x46xf32>
    %c0_5 = arith.constant 0 : index
    %c0_6 = arith.constant 0 : index
    %6 = vector.load %arg0[%c0_5, %c0_6] : memref<8x512xf32, #tpu.memory_space<vmem>>, vector<8x512xf32>
    %c0_7 = arith.constant 0 : index
    %c0_8 = arith.constant 0 : index
    %7 = vector.load %arg7[%c0_7, %c0_8] : memref<512x3xf32, #tpu.memory_space<vmem>>, vector<512x3xf32>
    %c0_9 = arith.constant 0 : index
    %c0_10 = arith.constant 0 : index
    %8 = vector.load %arg8[%c0_9, %c0_10] : memref<1x3xf32, #tpu.memory_space<vmem>>, vector<1x3xf32>
    %cst_11 = arith.constant dense<0.000000e+00> : vector<8x3xf32>
    %9 = tpu.matmul %6, %7, %cst_11 {dimension_numbers = #tpu.dot_dimension_numbers<[1], [0], [0], [1], [0, 0, 1, 1], [], []>} : vector<8x512xf32>, vector<512x3xf32>, vector<8x3xf32> -> vector<8x3xf32>
    %10 = vector.broadcast %8 : vector<1x3xf32> to vector<8x3xf32>
    %11 = arith.addf %9, %10 : vector<8x3xf32>
    %c0_12 = arith.constant 0 : index
    %c0_13 = arith.constant 0 : index
    %12 = vector.load %arg2[%c0_12, %c0_13] : memref<8x512xf32, #tpu.memory_space<vmem>>, vector<8x512xf32>
    %c0_14 = arith.constant 0 : index
    %c0_15 = arith.constant 0 : index
    %13 = vector.load %arg9[%c0_14, %c0_15] : memref<512x50xf32, #tpu.memory_space<vmem>>, vector<512x50xf32>
    %c0_16 = arith.constant 0 : index
    %c0_17 = arith.constant 0 : index
    %14 = vector.load %arg10[%c0_16, %c0_17] : memref<1x50xf32, #tpu.memory_space<vmem>>, vector<1x50xf32>
    %cst_18 = arith.constant dense<0.000000e+00> : vector<8x50xf32>
    %15 = tpu.matmul %12, %13, %cst_18 {dimension_numbers = #tpu.dot_dimension_numbers<[1], [0], [0], [1], [0, 0, 1, 1], [], []>} : vector<8x512xf32>, vector<512x50xf32>, vector<8x50xf32> -> vector<8x50xf32>
    %16 = vector.broadcast %14 : vector<1x50xf32> to vector<8x50xf32>
    %17 = arith.addf %15, %16 : vector<8x50xf32>
    %c0_19 = arith.constant 0 : index
    %c0_20 = arith.constant 0 : index
    %18 = vector.load %arg3[%c0_19, %c0_20] : memref<8x512xf32, #tpu.memory_space<vmem>>, vector<8x512xf32>
    %c0_21 = arith.constant 0 : index
    %c0_22 = arith.constant 0 : index
    %19 = vector.load %arg11[%c0_21, %c0_22] : memref<512x46xf32, #tpu.memory_space<vmem>>, vector<512x46xf32>
    %c0_23 = arith.constant 0 : index
    %c0_24 = arith.constant 0 : index
    %20 = vector.load %arg12[%c0_23, %c0_24] : memref<1x46xf32, #tpu.memory_space<vmem>>, vector<1x46xf32>
    %cst_25 = arith.constant dense<0.000000e+00> : vector<8x46xf32>
    %21 = tpu.matmul %18, %19, %cst_25 {dimension_numbers = #tpu.dot_dimension_numbers<[1], [0], [0], [1], [0, 0, 1, 1], [], []>} : vector<8x512xf32>, vector<512x46xf32>, vector<8x46xf32> -> vector<8x46xf32>
    %22 = vector.broadcast %20 : vector<1x46xf32> to vector<8x46xf32>
    %23 = arith.addf %21, %22 : vector<8x46xf32>
    %c0_26 = arith.constant 0 : index
    %c0_27 = arith.constant 0 : index
    %24 = vector.load %arg4[%c0_26, %c0_27] : memref<8x128xf32, #tpu.memory_space<vmem>>, vector<8x128xf32>
    %c0_28 = arith.constant 0 : index
    %c0_29 = arith.constant 0 : index
    %25 = vector.load %arg13[%c0_28, %c0_29] : memref<128x3xf32, #tpu.memory_space<vmem>>, vector<128x3xf32>
    %c0_30 = arith.constant 0 : index
    %c0_31 = arith.constant 0 : index
    %26 = vector.load %arg14[%c0_30, %c0_31] : memref<1x3xf32, #tpu.memory_space<vmem>>, vector<1x3xf32>
    %cst_32 = arith.constant dense<0.000000e+00> : vector<8x3xf32>
    %27 = tpu.matmul %24, %25, %cst_32 {dimension_numbers = #tpu.dot_dimension_numbers<[1], [0], [0], [1], [0, 0, 1, 1], [], []>} : vector<8x128xf32>, vector<128x3xf32>, vector<8x3xf32> -> vector<8x3xf32>
    %28 = vector.broadcast %26 : vector<1x3xf32> to vector<8x3xf32>
    %29 = arith.addf %27, %28 : vector<8x3xf32>
    %30 = tpu.iota {dimensions = array<i32: 1>} : vector<8x46xi32>
    %c0_33 = arith.constant 0 : index
    %c0_34 = arith.constant 0 : index
    %31 = vector.load %arg16[%c0_33, %c0_34] : memref<8x1xi32, #tpu.memory_space<vmem>>, vector<8x1xi32>
    %32 = vector.broadcast %31 : vector<8x1xi32> to vector<8x46xi32>
    %33 = arith.cmpi eq, %30, %32 : vector<8x46xi32>
    %34 = arith.extui %33 : vector<8x46xi1> to vector<8x46xi32>
    %35 = arith.sitofp %34 : vector<8x46xi32> to vector<8x46xf32>
    %36 = tpu.iota {dimensions = array<i32: 1>} : vector<8x3xi32>
    %c0_35 = arith.constant 0 : index
    %c0_36 = arith.constant 0 : index
    %37 = vector.load %arg17[%c0_35, %c0_36] : memref<8x1xi32, #tpu.memory_space<vmem>>, vector<8x1xi32>
    %38 = vector.broadcast %37 : vector<8x1xi32> to vector<8x3xi32>
    %39 = arith.cmpi eq, %36, %38 : vector<8x3xi32>
    %40 = arith.extui %39 : vector<8x3xi1> to vector<8x3xi32>
    %41 = arith.sitofp %40 : vector<8x3xi32> to vector<8x3xf32>
    %cst_37 = arith.constant dense<0xFF800000> : vector<8xf32>
    %42 = vector.multi_reduction <maximumf>, %5, %cst_37 [1] : vector<8x46xf32> to vector<8xf32>
    %43 = vector.shape_cast %42 : vector<8xf32> to vector<8x1xf32>
    %44 = vector.broadcast %43 : vector<8x1xf32> to vector<8x46xf32>
    %45 = arith.subf %5, %44 : vector<8x46xf32>
    %46 = math.exp %45 : vector<8x46xf32>
    %cst_38 = arith.constant dense<0.000000e+00> : vector<8xf32>
    %47 = vector.multi_reduction <add>, %46, %cst_38 [1] : vector<8x46xf32> to vector<8xf32>
    %48 = vector.shape_cast %47 : vector<8xf32> to vector<8x1xf32>
    %49 = vector.broadcast %43 : vector<8x1xf32> to vector<8x46xf32>
    %50 = arith.subf %5, %49 : vector<8x46xf32>
    %51 = math.log %48 : vector<8x1xf32>
    %52 = vector.broadcast %51 : vector<8x1xf32> to vector<8x46xf32>
    %53 = arith.subf %50, %52 : vector<8x46xf32>
    %54 = vector.broadcast %48 : vector<8x1xf32> to vector<8x46xf32>
    %55 = arith.divf %46, %54 : vector<8x46xf32>
    %cst_39 = arith.constant dense<0xFF800000> : vector<8xf32>
    %56 = vector.multi_reduction <maximumf>, %11, %cst_39 [1] : vector<8x3xf32> to vector<8xf32>
    %57 = vector.shape_cast %56 : vector<8xf32> to vector<8x1xf32>
    %58 = vector.broadcast %57 : vector<8x1xf32> to vector<8x3xf32>
    %59 = arith.subf %11, %58 : vector<8x3xf32>
    %60 = math.exp %59 : vector<8x3xf32>
    %cst_40 = arith.constant dense<0.000000e+00> : vector<8xf32>
    %61 = vector.multi_reduction <add>, %60, %cst_40 [1] : vector<8x3xf32> to vector<8xf32>
    %62 = vector.shape_cast %61 : vector<8xf32> to vector<8x1xf32>
    %63 = vector.broadcast %57 : vector<8x1xf32> to vector<8x3xf32>
    %64 = arith.subf %11, %63 : vector<8x3xf32>
    %65 = math.log %62 : vector<8x1xf32>
    %66 = vector.broadcast %65 : vector<8x1xf32> to vector<8x3xf32>
    %67 = arith.subf %64, %66 : vector<8x3xf32>
    %68 = vector.broadcast %62 : vector<8x1xf32> to vector<8x3xf32>
    %69 = arith.divf %60, %68 : vector<8x3xf32>
    %cst_41 = arith.constant dense<0xFF800000> : vector<8xf32>
    %70 = vector.multi_reduction <maximumf>, %23, %cst_41 [1] : vector<8x46xf32> to vector<8xf32>
    %71 = vector.shape_cast %70 : vector<8xf32> to vector<8x1xf32>
    %72 = vector.broadcast %71 : vector<8x1xf32> to vector<8x46xf32>
    %73 = arith.subf %23, %72 : vector<8x46xf32>
    %74 = math.exp %73 : vector<8x46xf32>
    %cst_42 = arith.constant dense<0.000000e+00> : vector<8xf32>
    %75 = vector.multi_reduction <add>, %74, %cst_42 [1] : vector<8x46xf32> to vector<8xf32>
    %76 = vector.shape_cast %75 : vector<8xf32> to vector<8x1xf32>
    %77 = vector.broadcast %71 : vector<8x1xf32> to vector<8x46xf32>
    %78 = arith.subf %23, %77 : vector<8x46xf32>
    %79 = math.log %76 : vector<8x1xf32>
    %80 = vector.broadcast %79 : vector<8x1xf32> to vector<8x46xf32>
    %81 = arith.subf %78, %80 : vector<8x46xf32>
    %cst_43 = arith.constant dense<0xFF800000> : vector<8xf32>
    %82 = vector.multi_reduction <maximumf>, %29, %cst_43 [1] : vector<8x3xf32> to vector<8xf32>
    %83 = vector.shape_cast %82 : vector<8xf32> to vector<8x1xf32>
    %84 = vector.broadcast %83 : vector<8x1xf32> to vector<8x3xf32>
    %85 = arith.subf %29, %84 : vector<8x3xf32>
    %86 = math.exp %85 : vector<8x3xf32>
    %cst_44 = arith.constant dense<0.000000e+00> : vector<8xf32>
    %87 = vector.multi_reduction <add>, %86, %cst_44 [1] : vector<8x3xf32> to vector<8xf32>
    %88 = vector.shape_cast %87 : vector<8xf32> to vector<8x1xf32>
    %89 = vector.broadcast %83 : vector<8x1xf32> to vector<8x3xf32>
    %90 = arith.subf %29, %89 : vector<8x3xf32>
    %91 = math.log %88 : vector<8x1xf32>
    %92 = vector.broadcast %91 : vector<8x1xf32> to vector<8x3xf32>
    %93 = arith.subf %90, %92 : vector<8x3xf32>
    %94 = arith.mulf %35, %53 : vector<8x46xf32>
    %cst_45 = arith.constant dense<0.000000e+00> : vector<8xf32>
    %95 = vector.multi_reduction <add>, %94, %cst_45 [1] : vector<8x46xf32> to vector<8xf32>
    %96 = vector.shape_cast %95 : vector<8xf32> to vector<8x1xf32>
    %cst_46 = arith.constant 0.000000e+00 : f32
    %97 = vector.broadcast %cst_46 : f32 to vector<8x1xf32>
    %98 = arith.subf %97, %96 : vector<8x1xf32>
    %cst_47 = arith.constant dense<0.000000e+00> : vector<8xf32>
    %99 = vector.multi_reduction <add>, %53, %cst_47 [1] : vector<8x46xf32> to vector<8xf32>
    %100 = vector.shape_cast %99 : vector<8xf32> to vector<8x1xf32>
    %cst_48 = arith.constant 0.899999976 : f32
    %101 = vector.broadcast %cst_48 : f32 to vector<8x1xf32>
    %102 = arith.mulf %101, %98 : vector<8x1xf32>
    %cst_49 = arith.constant 0.00217391294 : f32
    %103 = vector.broadcast %cst_49 : f32 to vector<8x1xf32>
    %104 = arith.mulf %103, %100 : vector<8x1xf32>
    %105 = arith.subf %102, %104 : vector<8x1xf32>
    %106 = vector.shape_cast %105 : vector<8x1xf32> to vector<1x8x1xf32>
    %cst_50 = arith.constant dense<0.000000e+00> : vector<1xf32>
    %107 = vector.multi_reduction <add>, %106, %cst_50 [1, 2] : vector<1x8x1xf32> to vector<1xf32>
    %108 = vector.shape_cast %107 : vector<1xf32> to vector<1x1x1xf32>
    %109 = vector.extract %108[0, 0, 0] : f32 from vector<1x1x1xf32>
    %cst_51 = arith.constant 1.250000e-01 : f32
    %110 = arith.mulf %109, %cst_51 : f32
    %111 = arith.mulf %41, %67 : vector<8x3xf32>
    %cst_52 = arith.constant dense<0.000000e+00> : vector<8xf32>
    %112 = vector.multi_reduction <add>, %111, %cst_52 [1] : vector<8x3xf32> to vector<8xf32>
    %113 = vector.shape_cast %112 : vector<8xf32> to vector<8x1xf32>
    %cst_53 = arith.constant 0.000000e+00 : f32
    %114 = vector.broadcast %cst_53 : f32 to vector<8x1xf32>
    %115 = arith.subf %114, %113 : vector<8x1xf32>
    %cst_54 = arith.constant dense<0.000000e+00> : vector<8xf32>
    %116 = vector.multi_reduction <add>, %67, %cst_54 [1] : vector<8x3xf32> to vector<8xf32>
    %117 = vector.shape_cast %116 : vector<8xf32> to vector<8x1xf32>
    %cst_55 = arith.constant 0.899999976 : f32
    %118 = vector.broadcast %cst_55 : f32 to vector<8x1xf32>
    %119 = arith.mulf %118, %115 : vector<8x1xf32>
    %cst_56 = arith.constant 0.0333333351 : f32
    %120 = vector.broadcast %cst_56 : f32 to vector<8x1xf32>
    %121 = arith.mulf %120, %117 : vector<8x1xf32>
    %122 = arith.subf %119, %121 : vector<8x1xf32>
    %123 = vector.shape_cast %122 : vector<8x1xf32> to vector<1x8x1xf32>
    %cst_57 = arith.constant dense<0.000000e+00> : vector<1xf32>
    %124 = vector.multi_reduction <add>, %123, %cst_57 [1, 2] : vector<1x8x1xf32> to vector<1xf32>
    %125 = vector.shape_cast %124 : vector<1xf32> to vector<1x1x1xf32>
    %126 = vector.extract %125[0, 0, 0] : f32 from vector<1x1x1xf32>
    %cst_58 = arith.constant 1.250000e-01 : f32
    %127 = arith.mulf %126, %cst_58 : f32
    %128 = arith.mulf %35, %81 : vector<8x46xf32>
    %cst_59 = arith.constant dense<0.000000e+00> : vector<8xf32>
    %129 = vector.multi_reduction <add>, %128, %cst_59 [1] : vector<8x46xf32> to vector<8xf32>
    %130 = vector.shape_cast %129 : vector<8xf32> to vector<8x1xf32>
    %cst_60 = arith.constant 0.000000e+00 : f32
    %131 = vector.broadcast %cst_60 : f32 to vector<8x1xf32>
    %132 = arith.subf %131, %130 : vector<8x1xf32>
    %cst_61 = arith.constant dense<0.000000e+00> : vector<8xf32>
    %133 = vector.multi_reduction <add>, %81, %cst_61 [1] : vector<8x46xf32> to vector<8xf32>
    %134 = vector.shape_cast %133 : vector<8xf32> to vector<8x1xf32>
    %cst_62 = arith.constant 0.899999976 : f32
    %135 = vector.broadcast %cst_62 : f32 to vector<8x1xf32>
    %136 = arith.mulf %135, %132 : vector<8x1xf32>
    %cst_63 = arith.constant 0.00217391294 : f32
    %137 = vector.broadcast %cst_63 : f32 to vector<8x1xf32>
    %138 = arith.mulf %137, %134 : vector<8x1xf32>
    %139 = arith.subf %136, %138 : vector<8x1xf32>
    %140 = vector.shape_cast %139 : vector<8x1xf32> to vector<1x8x1xf32>
    %cst_64 = arith.constant dense<0.000000e+00> : vector<1xf32>
    %141 = vector.multi_reduction <add>, %140, %cst_64 [1, 2] : vector<1x8x1xf32> to vector<1xf32>
    %142 = vector.shape_cast %141 : vector<1xf32> to vector<1x1x1xf32>
    %143 = vector.extract %142[0, 0, 0] : f32 from vector<1x1x1xf32>
    %cst_65 = arith.constant 1.250000e-01 : f32
    %144 = arith.mulf %143, %cst_65 : f32
    %145 = arith.mulf %41, %93 : vector<8x3xf32>
    %cst_66 = arith.constant dense<0.000000e+00> : vector<8xf32>
    %146 = vector.multi_reduction <add>, %145, %cst_66 [1] : vector<8x3xf32> to vector<8xf32>
    %147 = vector.shape_cast %146 : vector<8xf32> to vector<8x1xf32>
    %cst_67 = arith.constant 0.000000e+00 : f32
    %148 = vector.broadcast %cst_67 : f32 to vector<8x1xf32>
    %149 = arith.subf %148, %147 : vector<8x1xf32>
    %cst_68 = arith.constant dense<0.000000e+00> : vector<8xf32>
    %150 = vector.multi_reduction <add>, %93, %cst_68 [1] : vector<8x3xf32> to vector<8xf32>
    %151 = vector.shape_cast %150 : vector<8xf32> to vector<8x1xf32>
    %cst_69 = arith.constant 0.899999976 : f32
    %152 = vector.broadcast %cst_69 : f32 to vector<8x1xf32>
    %153 = arith.mulf %152, %149 : vector<8x1xf32>
    %cst_70 = arith.constant 0.0333333351 : f32
    %154 = vector.broadcast %cst_70 : f32 to vector<8x1xf32>
    %155 = arith.mulf %154, %151 : vector<8x1xf32>
    %156 = arith.subf %153, %155 : vector<8x1xf32>
    %157 = vector.shape_cast %156 : vector<8x1xf32> to vector<1x8x1xf32>
    %cst_71 = arith.constant dense<0.000000e+00> : vector<1xf32>
    %158 = vector.multi_reduction <add>, %157, %cst_71 [1, 2] : vector<1x8x1xf32> to vector<1xf32>
    %159 = vector.shape_cast %158 : vector<1xf32> to vector<1x1x1xf32>
    %160 = vector.extract %159[0, 0, 0] : f32 from vector<1x1x1xf32>
    %cst_72 = arith.constant 1.250000e-01 : f32
    %161 = arith.mulf %160, %cst_72 : f32
    %c0_73 = arith.constant 0 : index
    %c0_74 = arith.constant 0 : index
    %162 = vector.load %arg15[%c0_73, %c0_74] : memref<8x50xf32, #tpu.memory_space<vmem>>, vector<8x50xf32>
    %163 = math.absf %17 : vector<8x50xf32>
    %cst_75 = arith.constant 0.000000e+00 : f32
    %164 = vector.broadcast %cst_75 : f32 to vector<8x50xf32>
    %165 = arith.subf %164, %163 : vector<8x50xf32>
    %166 = math.exp %165 : vector<8x50xf32>
    %cst_76 = arith.constant 0.000000e+00 : f32
    %167 = vector.broadcast %cst_76 : f32 to vector<8x50xf32>
    %168 = arith.maximumf %17, %167 : vector<8x50xf32>
    %169 = arith.mulf %17, %162 : vector<8x50xf32>
    %170 = arith.subf %168, %169 : vector<8x50xf32>
    %171 = math.log1p %166 : vector<8x50xf32>
    %172 = arith.addf %170, %171 : vector<8x50xf32>
    %cst_77 = arith.constant 0.000000e+00 : f32
    %173 = vector.broadcast %cst_77 : f32 to vector<8x50xf32>
    %174 = arith.subf %173, %172 : vector<8x50xf32>
    %175 = math.exp %174 : vector<8x50xf32>
    %cst_78 = arith.constant 1.000000e+00 : f32
    %176 = vector.broadcast %cst_78 : f32 to vector<8x50xf32>
    %177 = arith.subf %176, %175 : vector<8x50xf32>
    %cst_79 = arith.constant 1.000000e+00 : f32
    %178 = vector.broadcast %cst_79 : f32 to vector<8x50xf32>
    %179 = arith.mulf %178, %177 : vector<8x50xf32>
    %180 = arith.mulf %179, %177 : vector<8x50xf32>
    %181 = arith.mulf %180, %172 : vector<8x50xf32>
    %182 = vector.shape_cast %181 : vector<8x50xf32> to vector<1x8x50xf32>
    %cst_80 = arith.constant dense<0.000000e+00> : vector<1xf32>
    %183 = vector.multi_reduction <add>, %182, %cst_80 [1, 2] : vector<1x8x50xf32> to vector<1xf32>
    %184 = vector.shape_cast %183 : vector<1xf32> to vector<1x1x1xf32>
    %185 = vector.extract %184[0, 0, 0] : f32 from vector<1x1x1xf32>
    %cst_81 = arith.constant 2.500000e-03 : f32
    %186 = arith.mulf %185, %cst_81 : f32
    %cst_82 = arith.constant 1.000000e+00 : f32
    %187 = vector.broadcast %cst_82 : f32 to vector<8x50xf32>
    %188 = arith.addf %187, %166 : vector<8x50xf32>
    %cst_83 = arith.constant 1.000000e+00 : f32
    %189 = vector.broadcast %cst_83 : f32 to vector<8x50xf32>
    %190 = arith.divf %189, %188 : vector<8x50xf32>
    %cst_84 = arith.constant 0.000000e+00 : f32
    %191 = vector.broadcast %cst_84 : f32 to vector<8x50xf32>
    %192 = arith.cmpf oge, %17, %191 : vector<8x50xf32>
    %193 = arith.mulf %166, %190 : vector<8x50xf32>
    %194 = arith.select %192, %190, %193 : vector<8x50xi1>, vector<8x50xf32>
    %195 = arith.addf %144, %161 : f32
    %cst_85 = arith.constant 1.000000e+00 : f32
    %196 = arith.mulf %cst_85, %110 : f32
    %cst_86 = arith.constant 5.000000e-01 : f32
    %197 = arith.mulf %cst_86, %127 : f32
    %198 = arith.addf %196, %197 : f32
    %cst_87 = arith.constant 3.000000e-01 : f32
    %199 = arith.mulf %cst_87, %186 : f32
    %200 = arith.addf %198, %199 : f32
    %cst_88 = arith.constant 2.500000e-01 : f32
    %201 = arith.mulf %cst_88, %195 : f32
    %202 = arith.addf %200, %201 : f32
    %c0_89 = arith.constant 0 : index
    %c0_90 = arith.constant 0 : index
    %203 = vector.load %arg18[%c0_89, %c0_90] : memref<8x46xf32, #tpu.memory_space<vmem>>, vector<8x46xf32>
    tpu.vector_store %arg18[%c0_89, %c0_90], %5 {strides = array<i32>} : memref<8x46xf32, #tpu.memory_space<vmem>>, vector<8x46xf32>,
    %c0_91 = arith.constant 0 : index
    %c0_92 = arith.constant 0 : index
    %204 = vector.load %arg19[%c0_91, %c0_92] : memref<8x3xf32, #tpu.memory_space<vmem>>, vector<8x3xf32>
    tpu.vector_store %arg19[%c0_91, %c0_92], %11 {strides = array<i32>} : memref<8x3xf32, #tpu.memory_space<vmem>>, vector<8x3xf32>,
    %c0_93 = arith.constant 0 : index
    %c0_94 = arith.constant 0 : index
    %205 = vector.load %arg20[%c0_93, %c0_94] : memref<8x50xf32, #tpu.memory_space<vmem>>, vector<8x50xf32>
    tpu.vector_store %arg20[%c0_93, %c0_94], %17 {strides = array<i32>} : memref<8x50xf32, #tpu.memory_space<vmem>>, vector<8x50xf32>,
    %c0_95 = arith.constant 0 : index
    %c0_96 = arith.constant 0 : index
    %206 = vector.load %arg21[%c0_95, %c0_96] : memref<8x46xf32, #tpu.memory_space<vmem>>, vector<8x46xf32>
    tpu.vector_store %arg21[%c0_95, %c0_96], %23 {strides = array<i32>} : memref<8x46xf32, #tpu.memory_space<vmem>>, vector<8x46xf32>,
    %c0_97 = arith.constant 0 : index
    %c0_98 = arith.constant 0 : index
    %207 = vector.load %arg22[%c0_97, %c0_98] : memref<8x3xf32, #tpu.memory_space<vmem>>, vector<8x3xf32>
    tpu.vector_store %arg22[%c0_97, %c0_98], %29 {strides = array<i32>} : memref<8x3xf32, #tpu.memory_space<vmem>>, vector<8x3xf32>,
    %c0_99 = arith.constant 0 : index
    %c0_100 = arith.constant 0 : index
    %208 = vector.load %arg23[%c0_99, %c0_100] : memref<8x46xf32, #tpu.memory_space<vmem>>, vector<8x46xf32>
    tpu.vector_store %arg23[%c0_99, %c0_100], %55 {strides = array<i32>} : memref<8x46xf32, #tpu.memory_space<vmem>>, vector<8x46xf32>,
    %c0_101 = arith.constant 0 : index
    %c0_102 = arith.constant 0 : index
    %209 = vector.load %arg24[%c0_101, %c0_102] : memref<8x3xf32, #tpu.memory_space<vmem>>, vector<8x3xf32>
    tpu.vector_store %arg24[%c0_101, %c0_102], %69 {strides = array<i32>} : memref<8x3xf32, #tpu.memory_space<vmem>>, vector<8x3xf32>,
    %c0_103 = arith.constant 0 : index
    %c0_104 = arith.constant 0 : index
    %210 = vector.load %arg25[%c0_103, %c0_104] : memref<8x50xf32, #tpu.memory_space<vmem>>, vector<8x50xf32>
    tpu.vector_store %arg25[%c0_103, %c0_104], %194 {strides = array<i32>} : memref<8x50xf32, #tpu.memory_space<vmem>>, vector<8x50xf32>,
    %c0_105 = arith.constant 0 : index
    %211 = memref.load %arg26[%c0_105] : memref<7xf32, #tpu.memory_space<smem>>
    memref.store %202, %arg26[%c0_105] : memref<7xf32, #tpu.memory_space<smem>>
    %c1 = arith.constant 1 : index
    %212 = memref.load %arg26[%c1] : memref<7xf32, #tpu.memory_space<smem>>
    memref.store %110, %arg26[%c1] : memref<7xf32, #tpu.memory_space<smem>>
    %c2 = arith.constant 2 : index
    %213 = memref.load %arg26[%c2] : memref<7xf32, #tpu.memory_space<smem>>
    memref.store %127, %arg26[%c2] : memref<7xf32, #tpu.memory_space<smem>>
    %c3 = arith.constant 3 : index
    %214 = memref.load %arg26[%c3] : memref<7xf32, #tpu.memory_space<smem>>
    memref.store %186, %arg26[%c3] : memref<7xf32, #tpu.memory_space<smem>>
    %c4 = arith.constant 4 : index
    %215 = memref.load %arg26[%c4] : memref<7xf32, #tpu.memory_space<smem>>
    memref.store %144, %arg26[%c4] : memref<7xf32, #tpu.memory_space<smem>>
    %c5 = arith.constant 5 : index
    %216 = memref.load %arg26[%c5] : memref<7xf32, #tpu.memory_space<smem>>
    memref.store %161, %arg26[%c5] : memref<7xf32, #tpu.memory_space<smem>>
    %c6 = arith.constant 6 : index
    %217 = memref.load %arg26[%c6] : memref<7xf32, #tpu.memory_space<smem>>
    memref.store %195, %arg26[%c6] : memref<7xf32, #tpu.memory_space<smem>>
    return
  }
}

</mosaic_0001>

<llo_original>
// kernel: tpu_custom_call.1
$region0: #{tpu_custom_call.1}
  #allocation0 [shape = 'u32[]', space=smem, size = 0x4, offset = 0x4, fixed_abs, tag = 'smem constant byte address 0x4 - core index']
  #allocation1 [shape = 'u32[144,128]{1,0:T(1,128)}', space=vmem, size = 0x12000, scoped, tag = 'internal scratch']
  %s0 = inlined_call_operand.vmem [shape: f32[8,512], index: 0, kind: input, shape index: {}]
  %s1 = inlined_call_operand.vmem [shape: f32[8,256], index: 1, kind: input, shape index: {}]
  %s2 = inlined_call_operand.vmem [shape: f32[8,512], index: 2, kind: input, shape index: {}]
  %s3 = inlined_call_operand.vmem [shape: f32[8,512], index: 3, kind: input, shape index: {}]
  %s4 = inlined_call_operand.vmem [shape: f32[8,128], index: 4, kind: input, shape index: {}]
  %s5 = inlined_call_operand.vmem [shape: f32[256,46], index: 5, kind: input, shape index: {}]
  %s6 = inlined_call_operand.vmem [shape: f32[1,46], index: 6, kind: input, shape index: {}]
  %s7 = inlined_call_operand.vmem [shape: f32[512,3], index: 7, kind: input, shape index: {}]
  %s8 = inlined_call_operand.vmem [shape: f32[1,3], index: 8, kind: input, shape index: {}]
  %s9 = inlined_call_operand.vmem [shape: f32[512,50], index: 9, kind: input, shape index: {}]
  %s10 = inlined_call_operand.vmem [shape: f32[1,50], index: 10, kind: input, shape index: {}]
  %s11 = inlined_call_operand.vmem [shape: f32[512,46], index: 11, kind: input, shape index: {}]
  %s12 = inlined_call_operand.vmem [shape: f32[1,46], index: 12, kind: input, shape index: {}]
  %s13 = inlined_call_operand.vmem [shape: f32[128,3], index: 13, kind: input, shape index: {}]
  %s14 = inlined_call_operand.vmem [shape: f32[1,3], index: 14, kind: input, shape index: {}]
  %s15 = inlined_call_operand.vmem [shape: f32[8,50], index: 15, kind: input, shape index: {}]
  %s16 = inlined_call_operand.vmem [shape: s32[8,1], index: 16, kind: input, shape index: {}]
  %s17 = inlined_call_operand.vmem [shape: s32[8,1], index: 17, kind: input, shape index: {}]
  %s18 = inlined_call_operand.hbm [shape: f32[8,46], index: 18, kind: output, shape index: {0}]
  %s19 = inlined_call_operand.vmem [shape: f32[8,3], index: 19, kind: output, shape index: {1}]
  %s20 = inlined_call_operand.hbm [shape: f32[8,50], index: 20, kind: output, shape index: {2}]
  %s21 = inlined_call_operand.hbm [shape: f32[8,46], index: 21, kind: output, shape index: {3}]
  %s22 = inlined_call_operand.vmem [shape: f32[8,3], index: 22, kind: output, shape index: {4}]
  %s23 = inlined_call_operand.hbm [shape: f32[8,46], index: 23, kind: output, shape index: {5}]
  %s24 = inlined_call_operand.vmem [shape: f32[8,3], index: 24, kind: output, shape index: {6}]
  %s25 = inlined_call_operand.hbm [shape: f32[8,50], index: 25, kind: output, shape index: {7}]
  %s26 = inlined_call_operand.hbm [shape: f32[7], index: 26, kind: output, shape index: {8}]
  %27 = xla_tuple %s18, %s19, %s20, %s21, %s22, %s23, %s24, %s25, %s26
  %s28 = sld [smem:[#allocation0]]
  $region146: #{tpu_custom_call.1} parent=0
    _
  %s30 = ssub.s32 1, %s28
  %s31 = scalar_select 0, %s30, %s28
  $region1: #{tpu_custom_call.1} parent=0
    #allocation2 [shape = 'u8[4096]{0}', space=vmem, size = 0x1000, scoped, tag = 'output window, operand 0, single buffered']
    #allocation3 [shape = 's32[1]{0}', space=sflag, size = 0x4, scoped, tag = 'scoped memory for tpu_custom_call.1']
    #allocation4 [shape = 's32[1]{0}', space=sflag, size = 0x4, scoped, tag = 'scoped memory for tpu_custom_call.1']
    #allocation5 [shape = 'u8[4096]{0}', space=vmem, size = 0x1000, scoped, tag = 'output window, operand 2, single buffered']
    #allocation6 [shape = 's32[1]{0}', space=sflag, size = 0x4, scoped, tag = 'scoped memory for tpu_custom_call.1']
    #allocation7 [shape = 'u8[4096]{0}', space=vmem, size = 0x1000, scoped, tag = 'output window, operand 3, single buffered']
    #allocation8 [shape = 'u8[4096]{0}', space=vmem, size = 0x1000, scoped, tag = 'output window, operand 5, single buffered']
    #allocation9 [shape = 's32[1]{0}', space=sflag, size = 0x4, scoped, tag = 'scoped memory for tpu_custom_call.1']
    #allocation10 [shape = 'u8[4096]{0}', space=vmem, size = 0x1000, scoped, tag = 'output window, operand 7, single buffered']
    #allocation11 [shape = 'u8[512]{0}', space=smem, size = 0x200, scoped, tag = 'output window, operand 8, single buffered']
    %32 = vsyncpa [#allocation3], 0
    %33 = vsyncpa [#allocation6], 0
    %34 = vsyncpa [#allocation9], 0
    %35 = vsyncpa [#allocation4], 0
    // Predicated region
    $region2: #{tpu_custom_call.1} parent=1 // pred_check
      _
    $region3: #{tpu_custom_call.1} parent=1 // pred_check_branch
      %37 = sbr.rel (0) target = $region5
    $region4: #{tpu_custom_call.1} parent=1 // pred_region
      _
    $region5: #{tpu_custom_call.1} parent=1 // pred_fallthru
      _
    // Predicated region
    $region6: #{tpu_custom_call.1} parent=1 // pred_check
      _
    $region7: #{tpu_custom_call.1} parent=1 // pred_check_branch
      %39 = sbr.rel (0) target = $region9
    $region8: #{tpu_custom_call.1} parent=1 // pred_region
      _
    $region9: #{tpu_custom_call.1} parent=1 // pred_fallthru
      _
    // Predicated region
    $region10: #{tpu_custom_call.1} parent=1 // pred_check
      _
    $region11: #{tpu_custom_call.1} parent=1 // pred_check_branch
      %41 = sbr.rel (0) target = $region13
    $region12: #{tpu_custom_call.1} parent=1 // pred_region
      _
    $region13: #{tpu_custom_call.1} parent=1 // pred_fallthru
      _
    // Predicated region
    $region14: #{tpu_custom_call.1} parent=1 // pred_check
      _
    $region15: #{tpu_custom_call.1} parent=1 // pred_check_branch
      %43 = sbr.rel (0) target = $region17
    $region16: #{tpu_custom_call.1} parent=1 // pred_region
      _
    $region17: #{tpu_custom_call.1} parent=1 // pred_fallthru
      _
    // Predicated region
    $region18: #{tpu_custom_call.1} parent=1 // pred_check
      _
    $region19: #{tpu_custom_call.1} parent=1 // pred_check_branch
      %45 = sbr.rel (0) target = $region21
    $region20: #{tpu_custom_call.1} parent=1 // pred_region
      _
    $region21: #{tpu_custom_call.1} parent=1 // pred_fallthru
      _
    // Predicated region
    $region22: #{tpu_custom_call.1} parent=1 // pred_check
      _
    $region23: #{tpu_custom_call.1} parent=1 // pred_check_branch
      %47 = sbr.rel (0) target = $region25
    $region24: #{tpu_custom_call.1} parent=1 // pred_region
      _
    $region25: #{tpu_custom_call.1} parent=1 // pred_fallthru
      _
    // Predicated region
    $region26: #{tpu_custom_call.1} parent=1 // pred_check
      _
    $region27: #{tpu_custom_call.1} parent=1 // pred_check_branch
      %49 = sbr.rel (0) target = $region29
    $region28: #{tpu_custom_call.1} parent=1 // pred_region
      _
    $region29: #{tpu_custom_call.1} parent=1 // pred_fallthru
      _
    // Predicated region
    $region30: #{tpu_custom_call.1} parent=1 // pred_check
      _
    $region31: #{tpu_custom_call.1} parent=1 // pred_check_branch
      %51 = sbr.rel (0) target = $region33
    $region32: #{tpu_custom_call.1} parent=1 // pred_region
      _
    $region33: #{tpu_custom_call.1} parent=1 // pred_fallthru
      _
    // Predicated region
    $region34: #{tpu_custom_call.1} parent=1 // pred_check
      _
    $region35: #{tpu_custom_call.1} parent=1 // pred_check_branch
      %53 = sbr.rel (0) target = $region37
    $region36: #{tpu_custom_call.1} parent=1 // pred_region
      _
    $region37: #{tpu_custom_call.1} parent=1 // pred_fallthru
      _
    // Predicated region
    $region38: #{tpu_custom_call.1} parent=1 // pred_check
      _
    $region39: #{tpu_custom_call.1} parent=1 // pred_check_branch
      %55 = sbr.rel (0) target = $region41
    $region40: #{tpu_custom_call.1} parent=1 // pred_region
      _
    $region41: #{tpu_custom_call.1} parent=1 // pred_fallthru
      _
    // Predicated region
    $region42: #{tpu_custom_call.1} parent=1 // pred_check
      _
    $region43: #{tpu_custom_call.1} parent=1 // pred_check_branch
      %57 = sbr.rel (0) target = $region45
    $region44: #{tpu_custom_call.1} parent=1 // pred_region
      _
    $region45: #{tpu_custom_call.1} parent=1 // pred_fallthru
      _
    // Predicated region
    $region46: #{tpu_custom_call.1} parent=1 // pred_check
      _
    $region47: #{tpu_custom_call.1} parent=1 // pred_check_branch
      %59 = sbr.rel (0) target = $region49
    $region48: #{tpu_custom_call.1} parent=1 // pred_region
      _
    $region49: #{tpu_custom_call.1} parent=1 // pred_fallthru
      _
    // Predicated region
    $region50: #{tpu_custom_call.1} parent=1 // pred_check
      _
    $region51: #{tpu_custom_call.1} parent=1 // pred_check_branch
      %61 = sbr.rel (0) target = $region53
    $region52: #{tpu_custom_call.1} parent=1 // pred_region
      _
    $region53: #{tpu_custom_call.1} parent=1 // pred_fallthru
      _
    // Predicated region
    $region54: #{tpu_custom_call.1} parent=1 // pred_check
      _
    $region55: #{tpu_custom_call.1} parent=1 // pred_check_branch
      %63 = sbr.rel (0) target = $region57
    $region56: #{tpu_custom_call.1} parent=1 // pred_region
      _
    $region57: #{tpu_custom_call.1} parent=1 // pred_fallthru
      _
    // Predicated region
    $region58: #{tpu_custom_call.1} parent=1 // pred_check
      _
    $region59: #{tpu_custom_call.1} parent=1 // pred_check_branch
      %65 = sbr.rel (0) target = $region61
    $region60: #{tpu_custom_call.1} parent=1 // pred_region
      _
    $region61: #{tpu_custom_call.1} parent=1 // pred_fallthru
      _
    // Predicated region
    $region62: #{tpu_custom_call.1} parent=1 // pred_check
      _
    $region63: #{tpu_custom_call.1} parent=1 // pred_check_branch
      %67 = sbr.rel (0) target = $region65
    $region64: #{tpu_custom_call.1} parent=1 // pred_region
      _
    $region65: #{tpu_custom_call.1} parent=1 // pred_fallthru
      _
    // Predicated region
    $region66: #{tpu_custom_call.1} parent=1 // pred_check
      _
    $region67: #{tpu_custom_call.1} parent=1 // pred_check_branch
      %69 = sbr.rel (0) target = $region69
    $region68: #{tpu_custom_call.1} parent=1 // pred_region
      _
    $region69: #{tpu_custom_call.1} parent=1 // pred_fallthru
      _
    // Predicated region
    $region70: #{tpu_custom_call.1} parent=1 // pred_check
      _
    $region71: #{tpu_custom_call.1} parent=1 // pred_check_branch
      %71 = sbr.rel (0) target = $region73
    $region72: #{tpu_custom_call.1} parent=1 // pred_region
      _
    $region73: #{tpu_custom_call.1} parent=1 // pred_fallthru
      _
    %v72 = vld [vmem:[%s1] sm:$0xff]
    %v73 = vld [vmem:[%s1 + $0x8] sm:$0xff]
    %v74 = vld [vmem:[%s5] sm:$0xff]
    %v75 = vld [vmem:[%s5 + $0x8] sm:$0xff]
    %v76 = vld [vmem:[%s5 + $0x10] sm:$0xff]
    %v77 = vld [vmem:[%s5 + $0x18] sm:$0xff]
    %v78 = vld [vmem:[%s5 + $0x20] sm:$0xff]
    %v79 = vld [vmem:[%s5 + $0x28] sm:$0xff]
    %v80 = vld [vmem:[%s5 + $0x30] sm:$0xff]
    %v81 = vld [vmem:[%s5 + $0x38] sm:$0xff]
    %v82 = vld [vmem:[%s5 + $0x40] sm:$0xff]
    %v83 = vld [vmem:[%s5 + $0x48] sm:$0xff]
    %v84 = vld [vmem:[%s5 + $0x50] sm:$0xff]
    %v85 = vld [vmem:[%s5 + $0x58] sm:$0xff]
    %v86 = vld [vmem:[%s5 + $0x60] sm:$0xff]
    %v87 = vld [vmem:[%s5 + $0x68] sm:$0xff]
    %v88 = vld [vmem:[%s5 + $0x70] sm:$0xff]
    %v89 = vld [vmem:[%s5 + $0x78] sm:$0xff]
    %v90 = vld [vmem:[%s5 + $0x80] sm:$0xff]
    %v91 = vld [vmem:[%s5 + $0x88] sm:$0xff]
    %v92 = vld [vmem:[%s5 + $0x90] sm:$0xff]
    %v93 = vld [vmem:[%s5 + $0x98] sm:$0xff]
    %v94 = vld [vmem:[%s5 + $0xa0] sm:$0xff]
    %v95 = vld [vmem:[%s5 + $0xa8] sm:$0xff]
    %v96 = vld [vmem:[%s5 + $0xb0] sm:$0xff]
    %v97 = vld [vmem:[%s5 + $0xb8] sm:$0xff]
    %v98 = vld [vmem:[%s5 + $0xc0] sm:$0xff]
    %v99 = vld [vmem:[%s5 + $0xc8] sm:$0xff]
    %v100 = vld [vmem:[%s5 + $0xd0] sm:$0xff]
    %v101 = vld [vmem:[%s5 + $0xd8] sm:$0xff]
    %v102 = vld [vmem:[%s5 + $0xe0] sm:$0xff]
    %v103 = vld [vmem:[%s5 + $0xe8] sm:$0xff]
    %v104 = vld [vmem:[%s5 + $0xf0] sm:$0xff]
    %v105 = vld [vmem:[%s5 + $0xf8] sm:$0xff]
    %v106 = vld [vmem:[%s6] sm:$0x1]
    %v108 = vlaneseq
    %v109 = vshrl.u32 %v108, 7
    %v110 = vsub.s32 0, %v109
    %v111 = vrot.slane %v106, %v110
    %113 = vmatprep.subr.mxu0 0.0
    %114 = vmatpush1.msra.mxu0 %v89
    %115 = vmatprep.subr.mxu0 0.0
    %116 = vmatpush1.msra.mxu0 %v88
    %117 = vmatprep.subr.mxu0 0.0
    %118 = vmatpush1.msra.mxu0 %v87
    %119 = vmatprep.subr.mxu0 0.0
    %120 = vmatpush1.msra.mxu0 %v86
    %121 = vmatprep.subr.mxu0 0.0
    %122 = vmatpush1.msra.mxu0 %v85
    %123 = vmatprep.subr.mxu0 0.0
    %124 = vmatpush1.msra.mxu0 %v84
    %125 = vmatprep.subr.mxu0 0.0
    %126 = vmatpush1.msra.mxu0 %v83
    %127 = vmatprep.subr.mxu0 0.0
    %128 = vmatpush1.msra.mxu0 %v82
    %129 = vmatprep.subr.mxu0 0.0
    %130 = vmatpush1.msra.mxu0 %v81
    %131 = vmatprep.subr.mxu0 0.0
    %132 = vmatpush1.msra.mxu0 %v80
    %133 = vmatprep.subr.mxu0 0.0
    %134 = vmatpush1.msra.mxu0 %v79
    %135 = vmatprep.subr.mxu0 0.0
    %136 = vmatpush1.msra.mxu0 %v78
    %137 = vmatprep.subr.mxu0 0.0
    %138 = vmatpush1.msra.mxu0 %v77
    %139 = vmatprep.subr.mxu0 0.0
    %140 = vmatpush1.msra.mxu0 %v76
    %141 = vmatprep.subr.mxu0 0.0
    %142 = vmatpush1.msra.mxu0 %v75
    %143 = vmatprep.subr.mxu0 0.0
    %144 = vmatpush1.msra.mxu0 %v74
    %145 = vmatprep.subr.mxu0 0.0
    %146 = vmatpush2.msra.mxu0 %v105
    %147 = vmatprep.subr.mxu0 0.0
    %148 = vmatpush2.msra.mxu0 %v104
    %149 = vmatprep.subr.mxu0 0.0
    %150 = vmatpush2.msra.mxu0 %v103
    %151 = vmatprep.subr.mxu0 0.0
    %152 = vmatpush2.msra.mxu0 %v102
    %153 = vmatprep.subr.mxu0 0.0
    %154 = vmatpush2.msra.mxu0 %v101
    %155 = vmatprep.subr.mxu0 0.0
    %156 = vmatpush2.msra.mxu0 %v100
    %157 = vmatprep.subr.mxu0 0.0
    %158 = vmatpush2.msra.mxu0 %v99
    %159 = vmatprep.subr.mxu0 0.0
    %160 = vmatpush2.msra.mxu0 %v98
    %161 = vmatprep.subr.mxu0 0.0
    %162 = vmatpush2.msra.mxu0 %v97
    %163 = vmatprep.subr.mxu0 0.0
    %164 = vmatpush2.msra.mxu0 %v96
    %165 = vmatprep.subr.mxu0 0.0
    %166 = vmatpush2.msra.mxu0 %v95
    %167 = vmatprep.subr.mxu0 0.0
    %168 = vmatpush2.msra.mxu0 %v94
    %169 = vmatprep.subr.mxu0 0.0
    %170 = vmatpush2.msra.mxu0 %v93
    %171 = vmatprep.subr.mxu0 0.0
    %172 = vmatpush2.msra.mxu0 %v92
    %173 = vmatprep.subr.mxu0 0.0
    %174 = vmatpush2.msra.mxu0 %v91
    %175 = vmatprep.subr.mxu0 0.0
    %176 = vmatpush2.msra.mxu0 %v90
    %177 = vmatprep.mubr.f32.mxu0 %v73
    %178 = vmatmul.mubr.f32.gmra.mxu0 %v72
    %v179 = vpop.f32.mrf.mxu0
    %v180 = vadd.f32 %v111, %v179
    %v181 = vpop.f32.mrf.mxu0
    %182 = vdwg.mxu0
    %v183 = vld [vmem:[%s0] sm:$0xff]
    %v184 = vld [vmem:[%s0 + $0x8] sm:$0xff]
    %v185 = vld [vmem:[%s0 + $0x10] sm:$0xff]
    %v186 = vld [vmem:[%s0 + $0x18] sm:$0xff]
    %v187 = vld [vmem:[%s7] sm:$0xff]
    %v188 = vld [vmem:[%s7 + $0x8] sm:$0xff]
    %v189 = vld [vmem:[%s7 + $0x10] sm:$0xff]
    %v190 = vld [vmem:[%s7 + $0x18] sm:$0xff]
    %v191 = vld [vmem:[%s7 + $0x20] sm:$0xff]
    %v192 = vld [vmem:[%s7 + $0x28] sm:$0xff]
    %v193 = vld [vmem:[%s7 + $0x30] sm:$0xff]
    %v194 = vld [vmem:[%s7 + $0x38] sm:$0xff]
    %v195 = vld [vmem:[%s7 + $0x40] sm:$0xff]
    %v196 = vld [vmem:[%s7 + $0x48] sm:$0xff]
    %v197 = vld [vmem:[%s7 + $0x50] sm:$0xff]
    %v198 = vld [vmem:[%s7 + $0x58] sm:$0xff]
    %v199 = vld [vmem:[%s7 + $0x60] sm:$0xff]
    %v200 = vld [vmem:[%s7 + $0x68] sm:$0xff]
    %v201 = vld [vmem:[%s7 + $0x70] sm:$0xff]
    %v202 = vld [vmem:[%s7 + $0x78] sm:$0xff]
    %v203 = vld [vmem:[%s7 + $0x80] sm:$0xff]
    %v204 = vld [vmem:[%s7 + $0x88] sm:$0xff]
    %v205 = vld [vmem:[%s7 + $0x90] sm:$0xff]
    %v206 = vld [vmem:[%s7 + $0x98] sm:$0xff]
    %v207 = vld [vmem:[%s7 + $0xa0] sm:$0xff]
    %v208 = vld [vmem:[%s7 + $0xa8] sm:$0xff]
    %v209 = vld [vmem:[%s7 + $0xb0] sm:$0xff]
    %v210 = vld [vmem:[%s7 + $0xb8] sm:$0xff]
    %v211 = vld [vmem:[%s7 + $0xc0] sm:$0xff]
    %v212 = vld [vmem:[%s7 + $0xc8] sm:$0xff]
    %v213 = vld [vmem:[%s7 + $0xd0] sm:$0xff]
    %v214 = vld [vmem:[%s7 + $0xd8] sm:$0xff]
    %v215 = vld [vmem:[%s7 + $0xe0] sm:$0xff]
    %v216 = vld [vmem:[%s7 + $0xe8] sm:$0xff]
    %v217 = vld [vmem:[%s7 + $0xf0] sm:$0xff]
    %v218 = vld [vmem:[%s7 + $0xf8] sm:$0xff]
    %v219 = vld [vmem:[%s7 + $0x100] sm:$0xff]
    %v220 = vld [vmem:[%s7 + $0x108] sm:$0xff]
    %v221 = vld [vmem:[%s7 + $0x110] sm:$0xff]
    %v222 = vld [vmem:[%s7 + $0x118] sm:$0xff]
    %v223 = vld [vmem:[%s7 + $0x120] sm:$0xff]
    %v224 = vld [vmem:[%s7 + $0x128] sm:$0xff]
    %v225 = vld [vmem:[%s7 + $0x130] sm:$0xff]
    %v226 = vld [vmem:[%s7 + $0x138] sm:$0xff]
    %v227 = vld [vmem:[%s7 + $0x140] sm:$0xff]
    %v228 = vld [vmem:[%s7 + $0x148] sm:$0xff]
    %v229 = vld [vmem:[%s7 + $0x150] sm:$0xff]
    %v230 = vld [vmem:[%s7 + $0x158] sm:$0xff]
    %v231 = vld [vmem:[%s7 + $0x160] sm:$0xff]
    %v232 = vld [vmem:[%s7 + $0x168] sm:$0xff]
    %v233 = vld [vmem:[%s7 + $0x170] sm:$0xff]
    %v234 = vld [vmem:[%s7 + $0x178] sm:$0xff]
    %v235 = vld [vmem:[%s7 + $0x180] sm:$0xff]
    %v236 = vld [vmem:[%s7 + $0x188] sm:$0xff]
    %v237 = vld [vmem:[%s7 + $0x190] sm:$0xff]
    %v238 = vld [vmem:[%s7 + $0x198] sm:$0xff]
    %v239 = vld [vmem:[%s7 + $0x1a0] sm:$0xff]
    %v240 = vld [vmem:[%s7 + $0x1a8] sm:$0xff]
    %v241 = vld [vmem:[%s7 + $0x1b0] sm:$0xff]
    %v242 = vld [vmem:[%s7 + $0x1b8] sm:$0xff]
    %v243 = vld [vmem:[%s7 + $0x1c0] sm:$0xff]
    %v244 = vld [vmem:[%s7 + $0x1c8] sm:$0xff]
    %v245 = vld [vmem:[%s7 + $0x1d0] sm:$0xff]
    %v246 = vld [vmem:[%s7 + $0x1d8] sm:$0xff]
    %v247 = vld [vmem:[%s7 + $0x1e0] sm:$0xff]
    %v248 = vld [vmem:[%s7 + $0x1e8] sm:$0xff]
    %v249 = vld [vmem:[%s7 + $0x1f0] sm:$0xff]
    %v250 = vld [vmem:[%s7 + $0x1f8] sm:$0xff]
    %v251 = vld [vmem:[%s8] sm:$0x1]
    %v253 = vlaneseq
    %v254 = vshrl.u32 %v253, 7
    %v255 = vsub.s32 0, %v254
    %v256 = vrot.slane %v251, %v255
    %258 = vmatprep.subr.mxu0 0.0
    %259 = vmatpush1.msra.mxu0 %v202
    %260 = vmatprep.subr.mxu0 0.0
    %261 = vmatpush1.msra.mxu0 %v201
    %262 = vmatprep.subr.mxu0 0.0
    %263 = vmatpush1.msra.mxu0 %v200
    %264 = vmatprep.subr.mxu0 0.0
    %265 = vmatpush1.msra.mxu0 %v199
    %266 = vmatprep.subr.mxu0 0.0
    %267 = vmatpush1.msra.mxu0 %v198
    %268 = vmatprep.subr.mxu0 0.0
    %269 = vmatpush1.msra.mxu0 %v197
    %270 = vmatprep.subr.mxu0 0.0
    %271 = vmatpush1.msra.mxu0 %v196
    %272 = vmatprep.subr.mxu0 0.0
    %273 = vmatpush1.msra.mxu0 %v195
    %274 = vmatprep.subr.mxu0 0.0
    %275 = vmatpush1.msra.mxu0 %v194
    %276 = vmatprep.subr.mxu0 0.0
    %277 = vmatpush1.msra.mxu0 %v193
    %278 = vmatprep.subr.mxu0 0.0
    %279 = vmatpush1.msra.mxu0 %v192
    %280 = vmatprep.subr.mxu0 0.0
    %281 = vmatpush1.msra.mxu0 %v191
    %282 = vmatprep.subr.mxu0 0.0
    %283 = vmatpush1.msra.mxu0 %v190
    %284 = vmatprep.subr.mxu0 0.0
    %285 = vmatpush1.msra.mxu0 %v189
    %286 = vmatprep.subr.mxu0 0.0
    %287 = vmatpush1.msra.mxu0 %v188
    %288 = vmatprep.subr.mxu0 0.0
    %289 = vmatpush1.msra.mxu0 %v187
    %290 = vmatprep.subr.mxu0 0.0
    %291 = vmatpush2.msra.mxu0 %v218
    %292 = vmatprep.subr.mxu0 0.0
    %293 = vmatpush2.msra.mxu0 %v217
    %294 = vmatprep.subr.mxu0 0.0
    %295 = vmatpush2.msra.mxu0 %v216
    %296 = vmatprep.subr.mxu0 0.0
    %297 = vmatpush2.msra.mxu0 %v215
    %298 = vmatprep.subr.mxu0 0.0
    %299 = vmatpush2.msra.mxu0 %v214
    %300 = vmatprep.subr.mxu0 0.0
    %301 = vmatpush2.msra.mxu0 %v213
    %302 = vmatprep.subr.mxu0 0.0
    %303 = vmatpush2.msra.mxu0 %v212
    %304 = vmatprep.subr.mxu0 0.0
    %305 = vmatpush2.msra.mxu0 %v211
    %306 = vmatprep.subr.mxu0 0.0
    %307 = vmatpush2.msra.mxu0 %v210
    %308 = vmatprep.subr.mxu0 0.0
    %309 = vmatpush2.msra.mxu0 %v209
    %310 = vmatprep.subr.mxu0 0.0
    %311 = vmatpush2.msra.mxu0 %v208
    %312 = vmatprep.subr.mxu0 0.0
    %313 = vmatpush2.msra.mxu0 %v207
    %314 = vmatprep.subr.mxu0 0.0
    %315 = vmatpush2.msra.mxu0 %v206
    %316 = vmatprep.subr.mxu0 0.0
    %317 = vmatpush2.msra.mxu0 %v205
    %318 = vmatprep.subr.mxu0 0.0
    %319 = vmatpush2.msra.mxu0 %v204
    %320 = vmatprep.subr.mxu0 0.0
    %321 = vmatpush2.msra.mxu0 %v203
    %322 = vmatprep.mubr.f32.mxu0 %v184
    %323 = vmatmul.mubr.f32.gmra.mxu0 %v183
    %v324 = vpop.f32.mrf.mxu0
    %v325 = vadd.f32 %v256, %v324
    %v326 = vpop.f32.mrf.mxu0
    %327 = vdwg.mxu0
    %328 = vmatprep.subr.mxu0 0.0
    %329 = vmatpush1.msra.mxu0 %v234
    %330 = vmatprep.subr.mxu0 0.0
    %331 = vmatpush1.msra.mxu0 %v233
    %332 = vmatprep.subr.mxu0 0.0
    %333 = vmatpush1.msra.mxu0 %v232
    %334 = vmatprep.subr.mxu0 0.0
    %335 = vmatpush1.msra.mxu0 %v231
    %336 = vmatprep.subr.mxu0 0.0
    %337 = vmatpush1.msra.mxu0 %v230
    %338 = vmatprep.subr.mxu0 0.0
    %339 = vmatpush1.msra.mxu0 %v229
    %340 = vmatprep.subr.mxu0 0.0
    %341 = vmatpush1.msra.mxu0 %v228
    %342 = vmatprep.subr.mxu0 0.0
    %343 = vmatpush1.msra.mxu0 %v227
    %344 = vmatprep.subr.mxu0 0.0
    %345 = vmatpush1.msra.mxu0 %v226
    %346 = vmatprep.subr.mxu0 0.0
    %347 = vmatpush1.msra.mxu0 %v225
    %348 = vmatprep.subr.mxu0 0.0
    %349 = vmatpush1.msra.mxu0 %v224
    %350 = vmatprep.subr.mxu0 0.0
    %351 = vmatpush1.msra.mxu0 %v223
    %352 = vmatprep.subr.mxu0 0.0
    %353 = vmatpush1.msra.mxu0 %v222
    %354 = vmatprep.subr.mxu0 0.0
    %355 = vmatpush1.msra.mxu0 %v221
    %356 = vmatprep.subr.mxu0 0.0
    %357 = vmatpush1.msra.mxu0 %v220
    %358 = vmatprep.subr.mxu0 0.0
    %359 = vmatpush1.msra.mxu0 %v219
    %360 = vmatprep.subr.mxu0 0.0
    %361 = vmatpush2.msra.mxu0 %v250
    %362 = vmatprep.subr.mxu0 0.0
    %363 = vmatpush2.msra.mxu0 %v249
    %364 = vmatprep.subr.mxu0 0.0
    %365 = vmatpush2.msra.mxu0 %v248
    %366 = vmatprep.subr.mxu0 0.0
    %367 = vmatpush2.msra.mxu0 %v247
    %368 = vmatprep.subr.mxu0 0.0
    %369 = vmatpush2.msra.mxu0 %v246
    %370 = vmatprep.subr.mxu0 0.0
    %371 = vmatpush2.msra.mxu0 %v245
    %372 = vmatprep.subr.mxu0 0.0
    %373 = vmatpush2.msra.mxu0 %v244
    %374 = vmatprep.subr.mxu0 0.0
    %375 = vmatpush2.msra.mxu0 %v243
    %376 = vmatprep.subr.mxu0 0.0
    %377 = vmatpush2.msra.mxu0 %v242
    %378 = vmatprep.subr.mxu0 0.0
    %379 = vmatpush2.msra.mxu0 %v241
    %380 = vmatprep.subr.mxu0 0.0
    %381 = vmatpush2.msra.mxu0 %v240
    %382 = vmatprep.subr.mxu0 0.0
    %383 = vmatpush2.msra.mxu0 %v239
    %384 = vmatprep.subr.mxu0 0.0
    %385 = vmatpush2.msra.mxu0 %v238
    %386 = vmatprep.subr.mxu0 0.0
    %387 = vmatpush2.msra.mxu0 %v237
    %388 = vmatprep.subr.mxu0 0.0
    %389 = vmatpush2.msra.mxu0 %v236
    %390 = vmatprep.subr.mxu0 0.0
    %391 = vmatpush2.msra.mxu0 %v235
    %392 = vmatprep.mubr.f32.mxu0 %v186
    %393 = vmatmul.mubr.f32.gmra.mxu0 %v185
    %v394 = vpop.f32.mrf.mxu0
    %v395 = vadd.f32 %v325, %v394
    %v396 = vpop.f32.mrf.mxu0
    %397 = vdwg.mxu0
    %v398 = vld [vmem:[%s2] sm:$0xff]
    %v399 = vld [vmem:[%s2 + $0x8] sm:$0xff]
    %v400 = vld [vmem:[%s2 + $0x10] sm:$0xff]
    %v401 = vld [vmem:[%s2 + $0x18] sm:$0xff]
    %v402 = vld [vmem:[%s9] sm:$0xff]
    %v403 = vld [vmem:[%s9 + $0x8] sm:$0xff]
    %v404 = vld [vmem:[%s9 + $0x10] sm:$0xff]
    %v405 = vld [vmem:[%s9 + $0x18] sm:$0xff]
    %v406 = vld [vmem:[%s9 + $0x20] sm:$0xff]
    %v407 = vld [vmem:[%s9 + $0x28] sm:$0xff]
    %v408 = vld [vmem:[%s9 + $0x30] sm:$0xff]
    %v409 = vld [vmem:[%s9 + $0x38] sm:$0xff]
    %v410 = vld [vmem:[%s9 + $0x40] sm:$0xff]
    %v411 = vld [vmem:[%s9 + $0x48] sm:$0xff]
    %v412 = vld [vmem:[%s9 + $0x50] sm:$0xff]
    %v413 = vld [vmem:[%s9 + $0x58] sm:$0xff]
    %v414 = vld [vmem:[%s9 + $0x60] sm:$0xff]
    %v415 = vld [vmem:[%s9 + $0x68] sm:$0xff]
    %v416 = vld [vmem:[%s9 + $0x70] sm:$0xff]
    %v417 = vld [vmem:[%s9 + $0x78] sm:$0xff]
    %v418 = vld [vmem:[%s9 + $0x80] sm:$0xff]
    %v419 = vld [vmem:[%s9 + $0x88] sm:$0xff]
    %v420 = vld [vmem:[%s9 + $0x90] sm:$0xff]
    %v421 = vld [vmem:[%s9 + $0x98] sm:$0xff]
    %v422 = vld [vmem:[%s9 + $0xa0] sm:$0xff]
    %v423 = vld [vmem:[%s9 + $0xa8] sm:$0xff]
    %v424 = vld [vmem:[%s9 + $0xb0] sm:$0xff]
    %v425 = vld [vmem:[%s9 + $0xb8] sm:$0xff]
    %v426 = vld [vmem:[%s9 + $0xc0] sm:$0xff]
    %v427 = vld [vmem:[%s9 + $0xc8] sm:$0xff]
    %v428 = vld [vmem:[%s9 + $0xd0] sm:$0xff]
    %v429 = vld [vmem:[%s9 + $0xd8] sm:$0xff]
    %v430 = vld [vmem:[%s9 + $0xe0] sm:$0xff]
    %v431 = vld [vmem:[%s9 + $0xe8] sm:$0xff]
    %v432 = vld [vmem:[%s9 + $0xf0] sm:$0xff]
    %v433 = vld [vmem:[%s9 + $0xf8] sm:$0xff]
    %v434 = vld [vmem:[%s9 + $0x100] sm:$0xff]
    %v435 = vld [vmem:[%s9 + $0x108] sm:$0xff]
    %v436 = vld [vmem:[%s9 + $0x110] sm:$0xff]
    %v437 = vld [vmem:[%s9 + $0x118] sm:$0xff]
    %v438 = vld [vmem:[%s9 + $0x120] sm:$0xff]
    %v439 = vld [vmem:[%s9 + $0x128] sm:$0xff]
    %v440 = vld [vmem:[%s9 + $0x130] sm:$0xff]
    %v441 = vld [vmem:[%s9 + $0x138] sm:$0xff]
    %v442 = vld [vmem:[%s9 + $0x140] sm:$0xff]
    %v443 = vld [vmem:[%s9 + $0x148] sm:$0xff]
    %v444 = vld [vmem:[%s9 + $0x150] sm:$0xff]
    %v445 = vld [vmem:[%s9 + $0x158] sm:$0xff]
    %v446 = vld [vmem:[%s9 + $0x160] sm:$0xff]
    %v447 = vld [vmem:[%s9 + $0x168] sm:$0xff]
    %v448 = vld [vmem:[%s9 + $0x170] sm:$0xff]
    %v449 = vld [vmem:[%s9 + $0x178] sm:$0xff]
    %v450 = vld [vmem:[%s9 + $0x180] sm:$0xff]
    %v451 = vld [vmem:[%s9 + $0x188] sm:$0xff]
    %v452 = vld [vmem:[%s9 + $0x190] sm:$0xff]
    %v453 = vld [vmem:[%s9 + $0x198] sm:$0xff]
    %v454 = vld [vmem:[%s9 + $0x1a0] sm:$0xff]
    %v455 = vld [vmem:[%s9 + $0x1a8] sm:$0xff]
    %v456 = vld [vmem:[%s9 + $0x1b0] sm:$0xff]
    %v457 = vld [vmem:[%s9 + $0x1b8] sm:$0xff]
    %v458 = vld [vmem:[%s9 + $0x1c0] sm:$0xff]
    %v459 = vld [vmem:[%s9 + $0x1c8] sm:$0xff]
    %v460 = vld [vmem:[%s9 + $0x1d0] sm:$0xff]
    %v461 = vld [vmem:[%s9 + $0x1d8] sm:$0xff]
    %v462 = vld [vmem:[%s9 + $0x1e0] sm:$0xff]
    %v463 = vld [vmem:[%s9 + $0x1e8] sm:$0xff]
    %v464 = vld [vmem:[%s9 + $0x1f0] sm:$0xff]
    %v465 = vld [vmem:[%s9 + $0x1f8] sm:$0xff]
    %v466 = vld [vmem:[%s10] sm:$0x1]
    %v468 = vlaneseq
    %v469 = vshrl.u32 %v468, 7
    %v470 = vsub.s32 0, %v469
    %v471 = vrot.slane %v466, %v470
    %473 = vmatprep.subr.mxu0 0.0
    %474 = vmatpush1.msra.mxu0 %v417
    %475 = vmatprep.subr.mxu0 0.0
    %476 = vmatpush1.msra.mxu0 %v416
    %477 = vmatprep.subr.mxu0 0.0
    %478 = vmatpush1.msra.mxu0 %v415
    %479 = vmatprep.subr.mxu0 0.0
    %480 = vmatpush1.msra.mxu0 %v414
    %481 = vmatprep.subr.mxu0 0.0
    %482 = vmatpush1.msra.mxu0 %v413
    %483 = vmatprep.subr.mxu0 0.0
    %484 = vmatpush1.msra.mxu0 %v412
    %485 = vmatprep.subr.mxu0 0.0
    %486 = vmatpush1.msra.mxu0 %v411
    %487 = vmatprep.subr.mxu0 0.0
    %488 = vmatpush1.msra.mxu0 %v410
    %489 = vmatprep.subr.mxu0 0.0
    %490 = vmatpush1.msra.mxu0 %v409
    %491 = vmatprep.subr.mxu0 0.0
    %492 = vmatpush1.msra.mxu0 %v408
    %493 = vmatprep.subr.mxu0 0.0
    %494 = vmatpush1.msra.mxu0 %v407
    %495 = vmatprep.subr.mxu0 0.0
    %496 = vmatpush1.msra.mxu0 %v406
    %497 = vmatprep.subr.mxu0 0.0
    %498 = vmatpush1.msra.mxu0 %v405
    %499 = vmatprep.subr.mxu0 0.0
    %500 = vmatpush1.msra.mxu0 %v404
    %501 = vmatprep.subr.mxu0 0.0
    %502 = vmatpush1.msra.mxu0 %v403
    %503 = vmatprep.subr.mxu0 0.0
    %504 = vmatpush1.msra.mxu0 %v402
    %505 = vmatprep.subr.mxu0 0.0
    %506 = vmatpush2.msra.mxu0 %v433
    %507 = vmatprep.subr.mxu0 0.0
    %508 = vmatpush2.msra.mxu0 %v432
    %509 = vmatprep.subr.mxu0 0.0
    %510 = vmatpush2.msra.mxu0 %v431
    %511 = vmatprep.subr.mxu0 0.0
    %512 = vmatpush2.msra.mxu0 %v430
    %513 = vmatprep.subr.mxu0 0.0
    %514 = vmatpush2.msra.mxu0 %v429
    %515 = vmatprep.subr.mxu0 0.0
    %516 = vmatpush2.msra.mxu0 %v428
    %517 = vmatprep.subr.mxu0 0.0
    %518 = vmatpush2.msra.mxu0 %v427
    %519 = vmatprep.subr.mxu0 0.0
    %520 = vmatpush2.msra.mxu0 %v426
    %521 = vmatprep.subr.mxu0 0.0
    %522 = vmatpush2.msra.mxu0 %v425
    %523 = vmatprep.subr.mxu0 0.0
    %524 = vmatpush2.msra.mxu0 %v424
    %525 = vmatprep.subr.mxu0 0.0
    %526 = vmatpush2.msra.mxu0 %v423
    %527 = vmatprep.subr.mxu0 0.0
    %528 = vmatpush2.msra.mxu0 %v422
    %529 = vmatprep.subr.mxu0 0.0
    %530 = vmatpush2.msra.mxu0 %v421
    %531 = vmatprep.subr.mxu0 0.0
    %532 = vmatpush2.msra.mxu0 %v420
    %533 = vmatprep.subr.mxu0 0.0
    %534 = vmatpush2.msra.mxu0 %v419
    %535 = vmatprep.subr.mxu0 0.0
    %536 = vmatpush2.msra.mxu0 %v418
    %537 = vmatprep.mubr.f32.mxu0 %v399
    %538 = vmatmul.mubr.f32.gmra.mxu0 %v398
    %v539 = vpop.f32.mrf.mxu0
    %v540 = vadd.f32 %v471, %v539
    %v541 = vpop.f32.mrf.mxu0
    %542 = vdwg.mxu0
    %543 = vmatprep.subr.mxu0 0.0
    %544 = vmatpush1.msra.mxu0 %v449
    %545 = vmatprep.subr.mxu0 0.0
    %546 = vmatpush1.msra.mxu0 %v448
    %547 = vmatprep.subr.mxu0 0.0
    %548 = vmatpush1.msra.mxu0 %v447
    %549 = vmatprep.subr.mxu0 0.0
    %550 = vmatpush1.msra.mxu0 %v446
    %551 = vmatprep.subr.mxu0 0.0
    %552 = vmatpush1.msra.mxu0 %v445
    %553 = vmatprep.subr.mxu0 0.0
    %554 = vmatpush1.msra.mxu0 %v444
    %555 = vmatprep.subr.mxu0 0.0
    %556 = vmatpush1.msra.mxu0 %v443
    %557 = vmatprep.subr.mxu0 0.0
    %558 = vmatpush1.msra.mxu0 %v442
    %559 = vmatprep.subr.mxu0 0.0
    %560 = vmatpush1.msra.mxu0 %v441
    %561 = vmatprep.subr.mxu0 0.0
    %562 = vmatpush1.msra.mxu0 %v440
    %563 = vmatprep.subr.mxu0 0.0
    %564 = vmatpush1.msra.mxu0 %v439
    %565 = vmatprep.subr.mxu0 0.0
    %566 = vmatpush1.msra.mxu0 %v438
    %567 = vmatprep.subr.mxu0 0.0
    %568 = vmatpush1.msra.mxu0 %v437
    %569 = vmatprep.subr.mxu0 0.0
    %570 = vmatpush1.msra.mxu0 %v436
    %571 = vmatprep.subr.mxu0 0.0
    %572 = vmatpush1.msra.mxu0 %v435
    %573 = vmatprep.subr.mxu0 0.0
    %574 = vmatpush1.msra.mxu0 %v434
    %575 = vmatprep.subr.mxu0 0.0
    %576 = vmatpush2.msra.mxu0 %v465
    %577 = vmatprep.subr.mxu0 0.0
    %578 = vmatpush2.msra.mxu0 %v464
    %579 = vmatprep.subr.mxu0 0.0
    %580 = vmatpush2.msra.mxu0 %v463
    %581 = vmatprep.subr.mxu0 0.0
    %582 = vmatpush2.msra.mxu0 %v462
    %583 = vmatprep.subr.mxu0 0.0
    %584 = vmatpush2.msra.mxu0 %v461
    %585 = vmatprep.subr.mxu0 0.0
    %586 = vmatpush2.msra.mxu0 %v460
    %587 = vmatprep.subr.mxu0 0.0
    %588 = vmatpush2.msra.mxu0 %v459
    %589 = vmatprep.subr.mxu0 0.0
    %590 = vmatpush2.msra.mxu0 %v458
    %591 = vmatprep.subr.mxu0 0.0
    %592 = vmatpush2.msra.mxu0 %v457
    %593 = vmatprep.subr.mxu0 0.0
    %594 = vmatpush2.msra.mxu0 %v456
    %595 = vmatprep.subr.mxu0 0.0
    %596 = vmatpush2.msra.mxu0 %v455
    %597 = vmatprep.subr.mxu0 0.0
    %598 = vmatpush2.msra.mxu0 %v454
    %599 = vmatprep.subr.mxu0 0.0
    %600 = vmatpush2.msra.mxu0 %v453
    %601 = vmatprep.subr.mxu0 0.0
    %602 = vmatpush2.msra.mxu0 %v452
    %603 = vmatprep.subr.mxu0 0.0
    %604 = vmatpush2.msra.mxu0 %v451
    %605 = vmatprep.subr.mxu0 0.0
    %606 = vmatpush2.msra.mxu0 %v450
    %607 = vmatprep.mubr.f32.mxu0 %v401
    %608 = vmatmul.mubr.f32.gmra.mxu0 %v400
    %v609 = vpop.f32.mrf.mxu0
    %v610 = vadd.f32 %v540, %v609
    %v611 = vpop.f32.mrf.mxu0
    %612 = vdwg.mxu0
    %v613 = vld [vmem:[%s3] sm:$0xff]
    %v614 = vld [vmem:[%s3 + $0x8] sm:$0xff]
    %v615 = vld [vmem:[%s3 + $0x10] sm:$0xff]
    %v616 = vld [vmem:[%s3 + $0x18] sm:$0xff]
    %v617 = vld [vmem:[%s11] sm:$0xff]
    %v618 = vld [vmem:[%s11 + $0x8] sm:$0xff]
    %v619 = vld [vmem:[%s11 + $0x10] sm:$0xff]
    %v620 = vld [vmem:[%s11 + $0x18] sm:$0xff]
    %v621 = vld [vmem:[%s11 + $0x20] sm:$0xff]
    %v622 = vld [vmem:[%s11 + $0x28] sm:$0xff]
    %v623 = vld [vmem:[%s11 + $0x30] sm:$0xff]
    %v624 = vld [vmem:[%s11 + $0x38] sm:$0xff]
    %v625 = vld [vmem:[%s11 + $0x40] sm:$0xff]
    %v626 = vld [vmem:[%s11 + $0x48] sm:$0xff]
    %v627 = vld [vmem:[%s11 + $0x50] sm:$0xff]
    %v628 = vld [vmem:[%s11 + $0x58] sm:$0xff]
    %v629 = vld [vmem:[%s11 + $0x60] sm:$0xff]
    %v630 = vld [vmem:[%s11 + $0x68] sm:$0xff]
    %v631 = vld [vmem:[%s11 + $0x70] sm:$0xff]
    %v632 = vld [vmem:[%s11 + $0x78] sm:$0xff]
    %v633 = vld [vmem:[%s11 + $0x80] sm:$0xff]
    %v634 = vld [vmem:[%s11 + $0x88] sm:$0xff]
    %v635 = vld [vmem:[%s11 + $0x90] sm:$0xff]
    %v636 = vld [vmem:[%s11 + $0x98] sm:$0xff]
    %v637 = vld [vmem:[%s11 + $0xa0] sm:$0xff]
    %v638 = vld [vmem:[%s11 + $0xa8] sm:$0xff]
    %v639 = vld [vmem:[%s11 + $0xb0] sm:$0xff]
    %v640 = vld [vmem:[%s11 + $0xb8] sm:$0xff]
    %v641 = vld [vmem:[%s11 + $0xc0] sm:$0xff]
    %v642 = vld [vmem:[%s11 + $0xc8] sm:$0xff]
    %v643 = vld [vmem:[%s11 + $0xd0] sm:$0xff]
    %v644 = vld [vmem:[%s11 + $0xd8] sm:$0xff]
    %v645 = vld [vmem:[%s11 + $0xe0] sm:$0xff]
    %v646 = vld [vmem:[%s11 + $0xe8] sm:$0xff]
    %v647 = vld [vmem:[%s11 + $0xf0] sm:$0xff]
    %v648 = vld [vmem:[%s11 + $0xf8] sm:$0xff]
    %v649 = vld [vmem:[%s11 + $0x100] sm:$0xff]
    %v650 = vld [vmem:[%s11 + $0x108] sm:$0xff]
    %v651 = vld [vmem:[%s11 + $0x110] sm:$0xff]
    %v652 = vld [vmem:[%s11 + $0x118] sm:$0xff]
    %v653 = vld [vmem:[%s11 + $0x120] sm:$0xff]
    %v654 = vld [vmem:[%s11 + $0x128] sm:$0xff]
    %v655 = vld [vmem:[%s11 + $0x130] sm:$0xff]
    %v656 = vld [vmem:[%s11 + $0x138] sm:$0xff]
    %v657 = vld [vmem:[%s11 + $0x140] sm:$0xff]
    %v658 = vld [vmem:[%s11 + $0x148] sm:$0xff]
    %v659 = vld [vmem:[%s11 + $0x150] sm:$0xff]
    %v660 = vld [vmem:[%s11 + $0x158] sm:$0xff]
    %v661 = vld [vmem:[%s11 + $0x160] sm:$0xff]
    %v662 = vld [vmem:[%s11 + $0x168] sm:$0xff]
    %v663 = vld [vmem:[%s11 + $0x170] sm:$0xff]
    %v664 = vld [vmem:[%s11 + $0x178] sm:$0xff]
    %v665 = vld [vmem:[%s11 + $0x180] sm:$0xff]
    %v666 = vld [vmem:[%s11 + $0x188] sm:$0xff]
    %v667 = vld [vmem:[%s11 + $0x190] sm:$0xff]
    %v668 = vld [vmem:[%s11 + $0x198] sm:$0xff]
    %v669 = vld [vmem:[%s11 + $0x1a0] sm:$0xff]
    %v670 = vld [vmem:[%s11 + $0x1a8] sm:$0xff]
    %v671 = vld [vmem:[%s11 + $0x1b0] sm:$0xff]
    %v672 = vld [vmem:[%s11 + $0x1b8] sm:$0xff]
    %v673 = vld [vmem:[%s11 + $0x1c0] sm:$0xff]
    %v674 = vld [vmem:[%s11 + $0x1c8] sm:$0xff]
    %v675 = vld [vmem:[%s11 + $0x1d0] sm:$0xff]
    %v676 = vld [vmem:[%s11 + $0x1d8] sm:$0xff]
    %v677 = vld [vmem:[%s11 + $0x1e0] sm:$0xff]
    %v678 = vld [vmem:[%s11 + $0x1e8] sm:$0xff]
    %v679 = vld [vmem:[%s11 + $0x1f0] sm:$0xff]
    %v680 = vld [vmem:[%s11 + $0x1f8] sm:$0xff]
    %v681 = vld [vmem:[%s12] sm:$0x1]
    %v683 = vlaneseq
    %v684 = vshrl.u32 %v683, 7
    %v685 = vsub.s32 0, %v684
    %v686 = vrot.slane %v681, %v685
    %688 = vmatprep.subr.mxu0 0.0
    %689 = vmatpush1.msra.mxu0 %v632
    %690 = vmatprep.subr.mxu0 0.0
    %691 = vmatpush1.msra.mxu0 %v631
    %692 = vmatprep.subr.mxu0 0.0
    %693 = vmatpush1.msra.mxu0 %v630
    %694 = vmatprep.subr.mxu0 0.0
    %695 = vmatpush1.msra.mxu0 %v629
    %696 = vmatprep.subr.mxu0 0.0
    %697 = vmatpush1.msra.mxu0 %v628
    %698 = vmatprep.subr.mxu0 0.0
    %699 = vmatpush1.msra.mxu0 %v627
    %700 = vmatprep.subr.mxu0 0.0
    %701 = vmatpush1.msra.mxu0 %v626
    %702 = vmatprep.subr.mxu0 0.0
    %703 = vmatpush1.msra.mxu0 %v625
    %704 = vmatprep.subr.mxu0 0.0
    %705 = vmatpush1.msra.mxu0 %v624
    %706 = vmatprep.subr.mxu0 0.0
    %707 = vmatpush1.msra.mxu0 %v623
    %708 = vmatprep.subr.mxu0 0.0
    %709 = vmatpush1.msra.mxu0 %v622
    %710 = vmatprep.subr.mxu0 0.0
    %711 = vmatpush1.msra.mxu0 %v621
    %712 = vmatprep.subr.mxu0 0.0
    %713 = vmatpush1.msra.mxu0 %v620
    %714 = vmatprep.subr.mxu0 0.0
    %715 = vmatpush1.msra.mxu0 %v619
    %716 = vmatprep.subr.mxu0 0.0
    %717 = vmatpush1.msra.mxu0 %v618
    %718 = vmatprep.subr.mxu0 0.0
    %719 = vmatpush1.msra.mxu0 %v617
    %720 = vmatprep.subr.mxu0 0.0
    %721 = vmatpush2.msra.mxu0 %v648
    %722 = vmatprep.subr.mxu0 0.0
    %723 = vmatpush2.msra.mxu0 %v647
    %724 = vmatprep.subr.mxu0 0.0
    %725 = vmatpush2.msra.mxu0 %v646
    %726 = vmatprep.subr.mxu0 0.0
    %727 = vmatpush2.msra.mxu0 %v645
    %728 = vmatprep.subr.mxu0 0.0
    %729 = vmatpush2.msra.mxu0 %v644
    %730 = vmatprep.subr.mxu0 0.0
    %731 = vmatpush2.msra.mxu0 %v643
    %732 = vmatprep.subr.mxu0 0.0
    %733 = vmatpush2.msra.mxu0 %v642
    %734 = vmatprep.subr.mxu0 0.0
    %735 = vmatpush2.msra.mxu0 %v641
    %736 = vmatprep.subr.mxu0 0.0
    %737 = vmatpush2.msra.mxu0 %v640
    %738 = vmatprep.subr.mxu0 0.0
    %739 = vmatpush2.msra.mxu0 %v639
    %740 = vmatprep.subr.mxu0 0.0
    %741 = vmatpush2.msra.mxu0 %v638
    %742 = vmatprep.subr.mxu0 0.0
    %743 = vmatpush2.msra.mxu0 %v637
    %744 = vmatprep.subr.mxu0 0.0
    %745 = vmatpush2.msra.mxu0 %v636
    %746 = vmatprep.subr.mxu0 0.0
    %747 = vmatpush2.msra.mxu0 %v635
    %748 = vmatprep.subr.mxu0 0.0
    %749 = vmatpush2.msra.mxu0 %v634
    %750 = vmatprep.subr.mxu0 0.0
    %751 = vmatpush2.msra.mxu0 %v633
    %752 = vmatprep.mubr.f32.mxu0 %v614
    %753 = vmatmul.mubr.f32.gmra.mxu0 %v613
    %v754 = vpop.f32.mrf.mxu0
    %v755 = vadd.f32 %v686, %v754
    %v756 = vpop.f32.mrf.mxu0
    %757 = vdwg.mxu0
    %758 = vmatprep.subr.mxu0 0.0
    %759 = vmatpush1.msra.mxu0 %v664
    %760 = vmatprep.subr.mxu0 0.0
    %761 = vmatpush1.msra.mxu0 %v663
    %762 = vmatprep.subr.mxu0 0.0
    %763 = vmatpush1.msra.mxu0 %v662
    %764 = vmatprep.subr.mxu0 0.0
    %765 = vmatpush1.msra.mxu0 %v661
    %766 = vmatprep.subr.mxu0 0.0
    %767 = vmatpush1.msra.mxu0 %v660
    %768 = vmatprep.subr.mxu0 0.0
    %769 = vmatpush1.msra.mxu0 %v659
    %770 = vmatprep.subr.mxu0 0.0
    %771 = vmatpush1.msra.mxu0 %v658
    %772 = vmatprep.subr.mxu0 0.0
    %773 = vmatpush1.msra.mxu0 %v657
    %774 = vmatprep.subr.mxu0 0.0
    %775 = vmatpush1.msra.mxu0 %v656
    %776 = vmatprep.subr.mxu0 0.0
    %777 = vmatpush1.msra.mxu0 %v655
    %778 = vmatprep.subr.mxu0 0.0
    %779 = vmatpush1.msra.mxu0 %v654
    %780 = vmatprep.subr.mxu0 0.0
    %781 = vmatpush1.msra.mxu0 %v653
    %782 = vmatprep.subr.mxu0 0.0
    %783 = vmatpush1.msra.mxu0 %v652
    %784 = vmatprep.subr.mxu0 0.0
    %785 = vmatpush1.msra.mxu0 %v651
    %786 = vmatprep.subr.mxu0 0.0
    %787 = vmatpush1.msra.mxu0 %v650
    %788 = vmatprep.subr.mxu0 0.0
    %789 = vmatpush1.msra.mxu0 %v649
    %790 = vmatprep.subr.mxu0 0.0
    %791 = vmatpush2.msra.mxu0 %v680
    %792 = vmatprep.subr.mxu0 0.0
    %793 = vmatpush2.msra.mxu0 %v679
    %794 = vmatprep.subr.mxu0 0.0
    %795 = vmatpush2.msra.mxu0 %v678
    %796 = vmatprep.subr.mxu0 0.0
    %797 = vmatpush2.msra.mxu0 %v677
    %798 = vmatprep.subr.mxu0 0.0
    %799 = vmatpush2.msra.mxu0 %v676
    %800 = vmatprep.subr.mxu0 0.0
    %801 = vmatpush2.msra.mxu0 %v675
    %802 = vmatprep.subr.mxu0 0.0
    %803 = vmatpush2.msra.mxu0 %v674
    %804 = vmatprep.subr.mxu0 0.0
    %805 = vmatpush2.msra.mxu0 %v673
    %806 = vmatprep.subr.mxu0 0.0
    %807 = vmatpush2.msra.mxu0 %v672
    %808 = vmatprep.subr.mxu0 0.0
    %809 = vmatpush2.msra.mxu0 %v671
    %810 = vmatprep.subr.mxu0 0.0
    %811 = vmatpush2.msra.mxu0 %v670
    %812 = vmatprep.subr.mxu0 0.0
    %813 = vmatpush2.msra.mxu0 %v669
    %814 = vmatprep.subr.mxu0 0.0
    %815 = vmatpush2.msra.mxu0 %v668
    %816 = vmatprep.subr.mxu0 0.0
    %817 = vmatpush2.msra.mxu0 %v667
    %818 = vmatprep.subr.mxu0 0.0
    %819 = vmatpush2.msra.mxu0 %v666
    %820 = vmatprep.subr.mxu0 0.0
    %821 = vmatpush2.msra.mxu0 %v665
    %822 = vmatprep.mubr.f32.mxu0 %v616
    %823 = vmatmul.mubr.f32.gmra.mxu0 %v615
    %v824 = vpop.f32.mrf.mxu0
    %v825 = vadd.f32 %v755, %v824
    %v826 = vpop.f32.mrf.mxu0
    %827 = vdwg.mxu0
    %v828 = vld [vmem:[%s4] sm:$0xff]
    %v829 = vld [vmem:[%s13] sm:$0xff]
    %v830 = vld [vmem:[%s13 + $0x8] sm:$0xff]
    %v831 = vld [vmem:[%s13 + $0x10] sm:$0xff]
    %v832 = vld [vmem:[%s13 + $0x18] sm:$0xff]
    %v833 = vld [vmem:[%s13 + $0x20] sm:$0xff]
    %v834 = vld [vmem:[%s13 + $0x28] sm:$0xff]
    %v835 = vld [vmem:[%s13 + $0x30] sm:$0xff]
    %v836 = vld [vmem:[%s13 + $0x38] sm:$0xff]
    %v837 = vld [vmem:[%s13 + $0x40] sm:$0xff]
    %v838 = vld [vmem:[%s13 + $0x48] sm:$0xff]
    %v839 = vld [vmem:[%s13 + $0x50] sm:$0xff]
    %v840 = vld [vmem:[%s13 + $0x58] sm:$0xff]
    %v841 = vld [vmem:[%s13 + $0x60] sm:$0xff]
    %v842 = vld [vmem:[%s13 + $0x68] sm:$0xff]
    %v843 = vld [vmem:[%s13 + $0x70] sm:$0xff]
    %v844 = vld [vmem:[%s13 + $0x78] sm:$0xff]
    %v845 = vld [vmem:[%s14] sm:$0x1]
    %v847 = vlaneseq
    %v848 = vshrl.u32 %v847, 7
    %v849 = vsub.s32 0, %v848
    %v850 = vrot.slane %v845, %v849
    %852 = vmatprep.subr.mxu0 0.0
    %853 = vmatpush1.msra.mxu0 %v844
    %854 = vmatprep.subr.mxu0 0.0
    %855 = vmatpush1.msra.mxu0 %v843
    %856 = vmatprep.subr.mxu0 0.0
    %857 = vmatpush1.msra.mxu0 %v842
    %858 = vmatprep.subr.mxu0 0.0
    %859 = vmatpush1.msra.mxu0 %v841
    %860 = vmatprep.subr.mxu0 0.0
    %861 = vmatpush1.msra.mxu0 %v840
    %862 = vmatprep.subr.mxu0 0.0
    %863 = vmatpush1.msra.mxu0 %v839
    %864 = vmatprep.subr.mxu0 0.0
    %865 = vmatpush1.msra.mxu0 %v838
    %866 = vmatprep.subr.mxu0 0.0
    %867 = vmatpush1.msra.mxu0 %v837
    %868 = vmatprep.subr.mxu0 0.0
    %869 = vmatpush1.msra.mxu0 %v836
    %870 = vmatprep.subr.mxu0 0.0
    %871 = vmatpush1.msra.mxu0 %v835
    %872 = vmatprep.subr.mxu0 0.0
    %873 = vmatpush1.msra.mxu0 %v834
    %874 = vmatprep.subr.mxu0 0.0
    %875 = vmatpush1.msra.mxu0 %v833
    %876 = vmatprep.subr.mxu0 0.0
    %877 = vmatpush1.msra.mxu0 %v832
    %878 = vmatprep.subr.mxu0 0.0
    %879 = vmatpush1.msra.mxu0 %v831
    %880 = vmatprep.subr.mxu0 0.0
    %881 = vmatpush1.msra.mxu0 %v830
    %882 = vmatprep.subr.mxu0 0.0
    %883 = vmatpush1.msra.mxu0 %v829
    %884 = vmatprep.subr.mxu0 0.0
    %885 = vmatpush2.msra.mxu0 0.0
    %886 = vmatprep.subr.mxu0 0.0
    %887 = vmatpush2.msra.mxu0 0.0
    %888 = vmatprep.subr.mxu0 0.0
    %889 = vmatpush2.msra.mxu0 0.0
    %890 = vmatprep.subr.mxu0 0.0
    %891 = vmatpush2.msra.mxu0 0.0
    %892 = vmatprep.subr.mxu0 0.0
    %893 = vmatpush2.msra.mxu0 0.0
    %894 = vmatprep.subr.mxu0 0.0
    %895 = vmatpush2.msra.mxu0 0.0
    %896 = vmatprep.subr.mxu0 0.0
    %897 = vmatpush2.msra.mxu0 0.0
    %898 = vmatprep.subr.mxu0 0.0
    %899 = vmatpush2.msra.mxu0 0.0
    %900 = vmatprep.subr.mxu0 0.0
    %901 = vmatpush2.msra.mxu0 0.0
    %902 = vmatprep.subr.mxu0 0.0
    %903 = vmatpush2.msra.mxu0 0.0
    %904 = vmatprep.subr.mxu0 0.0
    %905 = vmatpush2.msra.mxu0 0.0
    %906 = vmatprep.subr.mxu0 0.0
    %907 = vmatpush2.msra.mxu0 0.0
    %908 = vmatprep.subr.mxu0 0.0
    %909 = vmatpush2.msra.mxu0 0.0
    %910 = vmatprep.subr.mxu0 0.0
    %911 = vmatpush2.msra.mxu0 0.0
    %912 = vmatprep.subr.mxu0 0.0
    %913 = vmatpush2.msra.mxu0 0.0
    %914 = vmatprep.subr.mxu0 0.0
    %915 = vmatpush2.msra.mxu0 0.0
    %916 = vmatprep.mubr.f32.mxu0 0.0
    %917 = vmatmul.mubr.f32.gmra.mxu0 %v828
    %v918 = vpop.f32.mrf.mxu0
    %v919 = vadd.f32 %v850, %v918
    %v920 = vpop.f32.mrf.mxu0
    %921 = vdwg.mxu0
    %v922 = vlaneseq
    %v923 = vand.u32 %v922, 127
    %v924 = vld [vmem:[%s16] sm:$0xff]
    %925 = vset.pattern.permute.xlu0 0
    %926 = vperm.xlu0 %925, %v924
    %v927 = vpop.permute.xlu0 %926
    %vm928 = vcmp.eq.s32.totalorder %v923, %v927
    %v929 = vsel %vm928, 1, 0
    %v930 = vcvt.s32.f32 %v929
    %v931 = vld [vmem:[%s17] sm:$0xff]
    %932 = vset.pattern.permute.xlu0 0
    %933 = vperm.xlu0 %932, %v931
    %v934 = vpop.permute.xlu0 %933
    %vm935 = vcmp.eq.s32.totalorder %v923, %v934
    %v936 = vsel %vm935, 1, 0
    %v937 = vcvt.s32.f32 %v936
    %vm938 = vcmask 375808
    %v939 = vsel %vm938, %v180, -inf
    %940 = vmax.xlane.f32.xlu0 %v939
    %v941 = vpop.xlane.xlu0 %940
    %v942 = vsub.f32 %v180, %v941
    %v943 = vmul.f32 %v942, 1.442695
    %v944 = vpow.pop %v943
    %v945 = vsel %vm938, %v944, 0.0
    %946 = vadd.xlane.f32.xlu0 %v945
    %v947 = vpop.xlane.xlu0 %946
    %v948 = vlog2.pop %v947
    %v949 = vmul.f32 %v948, 0.6931472
    %v950 = vsub.f32 %v942, %v949
    %v951 = vrcp.pop %v947
    %v952 = vmul.f32 %v944, %v951
    %vm953 = vcmask 23552
    %v954 = vsel %vm953, %v395, -inf
    %955 = vmax.xlane.f32.xlu0 %v954
    %v956 = vpop.xlane.xlu0 %955
    %v957 = vsub.f32 %v395, %v956
    %v958 = vmul.f32 %v957, 1.442695
    %v959 = vpow.pop %v958
    %v960 = vsel %vm953, %v959, 0.0
    %961 = vadd.xlane.f32.xlu0 %v960
    %v962 = vpop.xlane.xlu0 %961
    %v963 = vlog2.pop %v962
    %v964 = vmul.f32 %v963, 0.6931472
    %v965 = vsub.f32 %v957, %v964
    %v966 = vrcp.pop %v962
    %v967 = vmul.f32 %v959, %v966
    %v968 = vsel %vm938, %v825, -inf
    %969 = vmax.xlane.f32.xlu0 %v968
    %v970 = vpop.xlane.xlu0 %969
    %v971 = vsub.f32 %v825, %v970
    %v972 = vmul.f32 %v971, 1.442695
    %v973 = vpow.pop %v972
    %v974 = vsel %vm938, %v973, 0.0
    %975 = vadd.xlane.f32.xlu0 %v974
    %v976 = vpop.xlane.xlu0 %975
    %v977 = vlog2.pop %v976
    %v978 = vmul.f32 %v977, 0.6931472
    %v979 = vsub.f32 %v971, %v978
    %v980 = vsel %vm953, %v919, -inf
    %981 = vmax.xlane.f32.xlu0 %v980
    %v982 = vpop.xlane.xlu0 %981
    %v983 = vsub.f32 %v919, %v982
    %v984 = vmul.f32 %v983, 1.442695
    %v985 = vpow.pop %v984
    %v986 = vsel %vm953, %v985, 0.0
    %987 = vadd.xlane.f32.xlu0 %v986
    %v988 = vpop.xlane.xlu0 %987
    %v989 = vlog2.pop %v988
    %v990 = vmul.f32 %v989, 0.6931472
    %v991 = vsub.f32 %v983, %v990
    %v992 = vmul.f32 %v930, %v950
    %v993 = vsel %vm938, %v992, 0.0
    %994 = vadd.xlane.f32.xlu0 %v993
    %v995 = vpop.xlane.xlu0 %994
    %v996 = vsub.f32 0.0, %v995
    %v997 = vsel %vm938, %v950, 0.0
    %998 = vadd.xlane.f32.xlu0 %v997
    %v999 = vpop.xlane.xlu0 %998
    %v1000 = vmul.f32 %v996, 0.9
    %v1001 = vmul.f32 %v999, 0.002173913
    %v1002 = vsub.f32 %v1000, %v1001
    %vm1003 = vcmask 7168
    %v1004 = vsel %vm1003, %v1002, 0.0
    %1005 = vadd.xlane.f32.xlu0 %v1004
    %v1006 = vpop.xlane.xlu0 %1005
    %v1007 = vrot.slane %v1006, 4
    %v1008 = vadd.f32 %v1006, %v1007
    %v1009 = vrot.slane %v1008, 2
    %v1010 = vadd.f32 %v1008, %v1009
    %v1011 = vrot.slane %v1010, 1
    %v1012 = vadd.f32 %v1010, %v1011
    %s1013 = vtos %v1012
    %s1014 = smul.f32 %s1013, 0.125
    %v1015 = vmul.f32 %v937, %v965
    %v1016 = vsel %vm953, %v1015, 0.0
    %1017 = vadd.xlane.f32.xlu0 %v1016
    %v1018 = vpop.xlane.xlu0 %1017
    %v1019 = vsub.f32 0.0, %v1018
    %v1020 = vsel %vm953, %v965, 0.0
    %1021 = vadd.xlane.f32.xlu0 %v1020
    %v1022 = vpop.xlane.xlu0 %1021
    %v1023 = vmul.f32 %v1019, 0.9
    %v1024 = vmul.f32 %v1022, 0.033333335
    %v1025 = vsub.f32 %v1023, %v1024
    %v1026 = vsel %vm1003, %v1025, 0.0
    %1027 = vadd.xlane.f32.xlu0 %v1026
    %v1028 = vpop.xlane.xlu0 %1027
    %v1029 = vrot.slane %v1028, 4
    %v1030 = vadd.f32 %v1028, %v1029
    %v1031 = vrot.slane %v1030, 2
    %v1032 = vadd.f32 %v1030, %v1031
    %v1033 = vrot.slane %v1032, 1
    %v1034 = vadd.f32 %v1032, %v1033
    %s1035 = vtos %v1034
    %s1036 = smul.f32 %s1035, 0.125
    %v1037 = vmul.f32 %v930, %v979
    %v1038 = vsel %vm938, %v1037, 0.0
    %1039 = vadd.xlane.f32.xlu0 %v1038
    %v1040 = vpop.xlane.xlu0 %1039
    %v1041 = vsub.f32 0.0, %v1040
    %v1042 = vsel %vm938, %v979, 0.0
    %1043 = vadd.xlane.f32.xlu0 %v1042
    %v1044 = vpop.xlane.xlu0 %1043
    %v1045 = vmul.f32 %v1041, 0.9
    %v1046 = vmul.f32 %v1044, 0.002173913
    %v1047 = vsub.f32 %v1045, %v1046
    %v1048 = vsel %vm1003, %v1047, 0.0
    %1049 = vadd.xlane.f32.xlu0 %v1048
    %v1050 = vpop.xlane.xlu0 %1049
    %v1051 = vrot.slane %v1050, 4
    %v1052 = vadd.f32 %v1050, %v1051
    %v1053 = vrot.slane %v1052, 2
    %v1054 = vadd.f32 %v1052, %v1053
    %v1055 = vrot.slane %v1054, 1
    %v1056 = vadd.f32 %v1054, %v1055
    %s1057 = vtos %v1056
    %s1058 = smul.f32 %s1057, 0.125
    %v1059 = vmul.f32 %v937, %v991
    %v1060 = vsel %vm953, %v1059, 0.0
    %1061 = vadd.xlane.f32.xlu0 %v1060
    %v1062 = vpop.xlane.xlu0 %1061
    %v1063 = vsub.f32 0.0, %v1062
    %v1064 = vsel %vm953, %v991, 0.0
    %1065 = vadd.xlane.f32.xlu0 %v1064
    %v1066 = vpop.xlane.xlu0 %1065
    %v1067 = vmul.f32 %v1063, 0.9
    %v1068 = vmul.f32 %v1066, 0.033333335
    %v1069 = vsub.f32 %v1067, %v1068
    %v1070 = vsel %vm1003, %v1069, 0.0
    %1071 = vadd.xlane.f32.xlu0 %v1070
    %v1072 = vpop.xlane.xlu0 %1071
    %v1073 = vrot.slane %v1072, 4
    %v1074 = vadd.f32 %v1072, %v1073
    %v1075 = vrot.slane %v1074, 2
    %v1076 = vadd.f32 %v1074, %v1075
    %v1077 = vrot.slane %v1076, 1
    %v1078 = vadd.f32 %v1076, %v1077
    %s1079 = vtos %v1078
    %s1080 = smul.f32 %s1079, 0.125
    %v1081 = vld [vmem:[%s15] sm:$0xff]
    %v1082 = vand.u32 2147483647, %v610
    %v1083 = vsub.f32 0.0, %v1082
    %v1084 = vmul.f32 %v1083, 1.442695
    %v1085 = vpow.pop %v1084
    %v1086 = vmax.f32 %v610, 0.0
    %v1087 = vmul.f32 %v610, %v1081
    %v1088 = vsub.f32 %v1086, %v1087
    %v1089 = vadd.f32 %v1085, 1.0
    %v1090 = vlog2.pop %v1089
    %v1091 = vmul.f32 %v1090, 0.6931472
    %v1092 = vmul.f32 -0.5, %v1085
    %v1093 = vadd.f32 %v1092, 1.0
    %v1094 = vmul.f32 %v1093, %v1085
    %v1095 = vand.u32 2147483647, %v1085
    %vm1096 = vcmp.lt.f32.partialorder %v1095, 0.0004427343
    %v1097 = vsel %vm1096, %v1094, %v1091
    %v1098 = vadd.f32 %v1088, %v1097
    %v1099 = vsub.f32 0.0, %v1098
    %v1100 = vmul.f32 %v1099, 1.442695
    %v1101 = vpow.pop %v1100
    %v1102 = vsub.f32 1.0, %v1101
    %v1103 = vmul.f32 %v1102, %v1102
    %v1104 = vmul.f32 %v1103, %v1098
    %vm1105 = vcmask 408576
    %v1106 = vsel %vm1105, %v1104, 0.0
    %1107 = vadd.xlane.f32.xlu0 %v1106
    %v1108 = vpop.xlane.xlu0 %1107
    %v1109 = vrot.slane %v1108, 4
    %v1110 = vadd.f32 %v1108, %v1109
    %v1111 = vrot.slane %v1110, 2
    %v1112 = vadd.f32 %v1110, %v1111
    %v1113 = vrot.slane %v1112, 1
    %v1114 = vadd.f32 %v1112, %v1113
    %s1115 = vtos %v1114
    %s1116 = smul.f32 %s1115, 0.0025
    %v1117 = vadd.f32 %v1085, 1.0
    %v1118 = vrcp.pop %v1117
    %v1119 = vmul.f32 1.0, %v1118
    %vm1120 = vcmp.ge.f32.partialorder %v610, 0.0
    %v1121 = vmul.f32 %v1085, %v1119
    %v1122 = vsel %vm1120, %v1119, %v1121
    %s1123 = sadd.f32 %s1058, %s1080
    %s1124 = smul.f32 %s1036, 0.5
    %s1125 = sadd.f32 %s1014, %s1124
    %s1126 = smul.f32 %s1116, 0.3
    %s1127 = sadd.f32 %s1125, %s1126
    %s1128 = smul.f32 %s1123, 0.25
    %s1129 = sadd.f32 %s1127, %s1128
    %1130 = vst.msk [vmem:[#allocation2] sm:$0xff] %vm938, %v180
    %1131 = vst.msk [vmem:[%s19] sm:$0xff] %vm953, %v395
    %1132 = vst.msk [vmem:[#allocation5] sm:$0xff] %vm1105, %v610
    %1133 = vst.msk [vmem:[#allocation7] sm:$0xff] %vm938, %v825
    %1134 = vst.msk [vmem:[%s22] sm:$0xff] %vm953, %v919
    %1135 = vst.msk [vmem:[#allocation8] sm:$0xff] %vm938, %v952
    %1136 = vst.msk [vmem:[%s24] sm:$0xff] %vm953, %v967
    %1137 = vst.msk [vmem:[#allocation10] sm:$0xff] %vm1105, %v1122
    %s1138 = scalar_lea.smem [#allocation11], 0
    %1139 = sst [smem:[%s1138]] %s1129
    %s1140 = scalar_lea.smem [#allocation11], 1
    %1141 = sst [smem:[%s1140]] %s1014
    %s1142 = scalar_lea.smem [#allocation11], 2
    %1143 = sst [smem:[%s1142]] %s1036
    %s1144 = scalar_lea.smem [#allocation11], 3
    %1145 = sst [smem:[%s1144]] %s1116
    %s1146 = scalar_lea.smem [#allocation11], 4
    %1147 = sst [smem:[%s1146]] %s1058
    %s1148 = scalar_lea.smem [#allocation11], 5
    %1149 = sst [smem:[%s1148]] %s1080
    %s1150 = scalar_lea.smem [#allocation11], 6
    %1151 = sst [smem:[%s1150]] %s1123
    // Predicated region
    $region74: #{tpu_custom_call.1} parent=1 // pred_check
      _
    $region75: #{tpu_custom_call.1} parent=1 // pred_check_branch
      %1153 = sbr.rel (0) target = $region77
    $region76: #{tpu_custom_call.1} parent=1 // pred_region
      %s1155 = ssub.s32 128, 128
      %1156 = vsyncadd [#allocation3], %s1155
      %s1158 = sshll.u32 [#allocation2], 4
      %s1159 = int_to_ptr.vmem [resolvable:$true] %s1158
      %1161 = dma.vmem_to_hbm [thread:$0]  %s1159, 128, %s18, [#allocation3]
    $region77: #{tpu_custom_call.1} parent=1 // pred_fallthru
      _
    // Predicated region
    $region78: #{tpu_custom_call.1} parent=1 // pred_check
      _
    $region79: #{tpu_custom_call.1} parent=1 // pred_check_branch
      %1163 = sbr.rel (0) target = $region81
    $region80: #{tpu_custom_call.1} parent=1 // pred_region
      _
    $region81: #{tpu_custom_call.1} parent=1 // pred_fallthru
      _
    // Predicated region
    $region82: #{tpu_custom_call.1} parent=1 // pred_check
      _
    $region83: #{tpu_custom_call.1} parent=1 // pred_check_branch
      %1165 = sbr.rel (0) target = $region85
    $region84: #{tpu_custom_call.1} parent=1 // pred_region
      %s1167 = ssub.s32 128, 128
      %1168 = vsyncadd [#allocation6], %s1167
      %s1170 = sshll.u32 [#allocation5], 4
      %s1171 = int_to_ptr.vmem [resolvable:$true] %s1170
      %1173 = dma.vmem_to_hbm [thread:$0]  %s1171, 128, %s20, [#allocation6]
    $region85: #{tpu_custom_call.1} parent=1 // pred_fallthru
      _
    // Predicated region
    $region86: #{tpu_custom_call.1} parent=1 // pred_check
      _
    $region87: #{tpu_custom_call.1} parent=1 // pred_check_branch
      %1175 = sbr.rel (0) target = $region89
    $region88: #{tpu_custom_call.1} parent=1 // pred_region
      %s1177 = ssub.s32 128, 128
      %1178 = vsyncadd [#allocation6], %s1177
      %s1180 = sshll.u32 [#allocation7], 4
      %s1181 = int_to_ptr.vmem [resolvable:$true] %s1180
      %1183 = dma.vmem_to_hbm [thread:$0]  %s1181, 128, %s21, [#allocation6]
    $region89: #{tpu_custom_call.1} parent=1 // pred_fallthru
      _
    // Predicated region
    $region90: #{tpu_custom_call.1} parent=1 // pred_check
      _
    $region91: #{tpu_custom_call.1} parent=1 // pred_check_branch
      %1185 = sbr.rel (0) target = $region93
    $region92: #{tpu_custom_call.1} parent=1 // pred_region
      _
    $region93: #{tpu_custom_call.1} parent=1 // pred_fallthru
      _
    // Predicated region
    $region94: #{tpu_custom_call.1} parent=1 // pred_check
      _
    $region95: #{tpu_custom_call.1} parent=1 // pred_check_branch
      %1187 = sbr.rel (0) target = $region97
    $region96: #{tpu_custom_call.1} parent=1 // pred_region
      %s1189 = ssub.s32 128, 128
      %1190 = vsyncadd [#allocation9], %s1189
      %s1192 = sshll.u32 [#allocation8], 4
      %s1193 = int_to_ptr.vmem [resolvable:$true] %s1192
      %1195 = dma.vmem_to_hbm [thread:$0]  %s1193, 128, %s23, [#allocation9]
    $region97: #{tpu_custom_call.1} parent=1 // pred_fallthru
      _
    // Predicated region
    $region98: #{tpu_custom_call.1} parent=1 // pred_check
      _
    $region99: #{tpu_custom_call.1} parent=1 // pred_check_branch
      %1197 = sbr.rel (0) target = $region101
    $region100: #{tpu_custom_call.1} parent=1 // pred_region
      _
    $region101: #{tpu_custom_call.1} parent=1 // pred_fallthru
      _
    // Predicated region
    $region102: #{tpu_custom_call.1} parent=1 // pred_check
      _
    $region103: #{tpu_custom_call.1} parent=1 // pred_check_branch
      %1199 = sbr.rel (0) target = $region105
    $region104: #{tpu_custom_call.1} parent=1 // pred_region
      %s1201 = ssub.s32 128, 128
      %1202 = vsyncadd [#allocation9], %s1201
      %s1204 = sshll.u32 [#allocation10], 4
      %s1205 = int_to_ptr.vmem [resolvable:$true] %s1204
      %1207 = dma.vmem_to_hbm [thread:$0]  %s1205, 128, %s25, [#allocation9]
    $region105: #{tpu_custom_call.1} parent=1 // pred_fallthru
      _
    // Predicated region
    $region106: #{tpu_custom_call.1} parent=1 // pred_check
      _
    $region107: #{tpu_custom_call.1} parent=1 // pred_check_branch
      %1209 = sbr.rel (0) target = $region109
    $region108: #{tpu_custom_call.1} parent=1 // pred_region
      %s1211 = ssub.s32 16, 16
      %1212 = vsyncadd [#allocation4], %s1211
      %1215 = dma.smem_to_hbm [#allocation11], 16, %s26, [#allocation4]
    $region109: #{tpu_custom_call.1} parent=1 // pred_fallthru
      _
    // Predicated region
    $region110: #{tpu_custom_call.1} parent=1 // pred_check
      _
    $region111: #{tpu_custom_call.1} parent=1 // pred_check_branch
      %1217 = sbr.rel (0) target = $region113
    $region112: #{tpu_custom_call.1} parent=1 // pred_region
      %1218 = dma.done [#allocation3], 128
    $region113: #{tpu_custom_call.1} parent=1 // pred_fallthru
      _
    // Predicated region
    $region114: #{tpu_custom_call.1} parent=1 // pred_check
      _
    $region115: #{tpu_custom_call.1} parent=1 // pred_check_branch
      %1220 = sbr.rel (0) target = $region117
    $region116: #{tpu_custom_call.1} parent=1 // pred_region
      _
    $region117: #{tpu_custom_call.1} parent=1 // pred_fallthru
      _
    // Predicated region
    $region118: #{tpu_custom_call.1} parent=1 // pred_check
      _
    $region119: #{tpu_custom_call.1} parent=1 // pred_check_branch
      %1222 = sbr.rel (0) target = $region121
    $region120: #{tpu_custom_call.1} parent=1 // pred_region
      %1223 = dma.done [#allocation6], 128
    $region121: #{tpu_custom_call.1} parent=1 // pred_fallthru
      _
    // Predicated region
    $region122: #{tpu_custom_call.1} parent=1 // pred_check
      _
    $region123: #{tpu_custom_call.1} parent=1 // pred_check_branch
      %1225 = sbr.rel (0) target = $region125
    $region124: #{tpu_custom_call.1} parent=1 // pred_region
      %1226 = dma.done [#allocation6], 128
    $region125: #{tpu_custom_call.1} parent=1 // pred_fallthru
      _
    // Predicated region
    $region126: #{tpu_custom_call.1} parent=1 // pred_check
      _
    $region127: #{tpu_custom_call.1} parent=1 // pred_check_branch
      %1228 = sbr.rel (0) target = $region129
    $region128: #{tpu_custom_call.1} parent=1 // pred_region
      _
    $region129: #{tpu_custom_call.1} parent=1 // pred_fallthru
      _
    // Predicated region
    $region130: #{tpu_custom_call.1} parent=1 // pred_check
      _
    $region131: #{tpu_custom_call.1} parent=1 // pred_check_branch
      %1230 = sbr.rel (0) target = $region133
    $region132: #{tpu_custom_call.1} parent=1 // pred_region
      %1231 = dma.done [#allocation9], 128
    $region133: #{tpu_custom_call.1} parent=1 // pred_fallthru
      _
    // Predicated region
    $region134: #{tpu_custom_call.1} parent=1 // pred_check
      _
    $region135: #{tpu_custom_call.1} parent=1 // pred_check_branch
      %1233 = sbr.rel (0) target = $region137
    $region136: #{tpu_custom_call.1} parent=1 // pred_region
      _
    $region137: #{tpu_custom_call.1} parent=1 // pred_fallthru
      _
    // Predicated region
    $region138: #{tpu_custom_call.1} parent=1 // pred_check
      _
    $region139: #{tpu_custom_call.1} parent=1 // pred_check_branch
      %1235 = sbr.rel (0) target = $region141
    $region140: #{tpu_custom_call.1} parent=1 // pred_region
      %1236 = dma.done [#allocation9], 128
    $region141: #{tpu_custom_call.1} parent=1 // pred_fallthru
      _
    // Predicated region
    $region142: #{tpu_custom_call.1} parent=1 // pred_check
      _
    $region143: #{tpu_custom_call.1} parent=1 // pred_check_branch
      %1238 = sbr.rel (0) target = $region145
    $region144: #{tpu_custom_call.1} parent=1 // pred_region
      %1239 = dma.done [#allocation4], 16
    $region145: #{tpu_custom_call.1} parent=1 // pred_fallthru
      _
    %1240 = sfence
    %1241 = vsyncpa [#allocation3], 1
    %1242 = vsyncpa [#allocation6], 1
    %1243 = vsyncpa [#allocation9], 1
    %1244 = vsyncpa [#allocation4], 1

</llo_original>
